<compile_context>
chip_gen: v7x
topology: tpu7x:2x2x1
jax: 0.10.0
libtpu: 0.0.40
codegen_flags: <defaults>
</compile_context>

<pallas_src>
import functools
import math

import jax
import jax.numpy as jnp
from jax import lax
from jax.experimental import pallas as pl
from jax.experimental.pallas import tpu as pltpu


def _fused_rnn_kernel(gih0_ref, h0_ref, whh_ref, wih_up_ref, b_up_ref,
                      out_ref, hn_ref, *, num_layers, hidden, num_dir,
                      nonlinearity):
    """Whole-network RNN forward: all layers, both directions, one kernel.

    Shapes (DH = num_dir * hidden):
      gih0_ref  : (seq, batch, DH)   layer-0 input projection + bias, both
                                     direction halves in forward time order
      h0_ref    : (num_layers, batch, DH)  fused initial hidden [h_fwd | h_rev]
      whh_ref   : (num_layers, DH, DH)     block-diag [[Wf^T, 0], [0, Wr^T]]
      wih_up_ref: (max(L-1,1), DH, DH)     upper-layer [Wf^T | Wr^T]
      b_up_ref  : (max(L-1,1), 1, DH)      upper-layer fused bias
      out_ref   : (seq, batch, DH)         last-layer output, forward time
      hn_ref    : (num_layers, batch, DH)  fused final hidden per layer
    """
    seq, batch, DH = gih0_ref.shape
    H = hidden
    act = jnp.tanh if nonlinearity == "tanh" else (
        lambda v: jnp.maximum(v, 0.0))

    if num_dir == 2:
        lane = lax.broadcasted_iota(jnp.int32, (batch, DH), 1)
        is_fwd_lane = lane < H          # True on the forward-direction half
    else:
        is_fwd_lane = None

    def run_layer(gih_rows, h0, w_blk):
        """One layer, both directions advanced together per step.

        gih_rows[t]: (batch, DH) input-projection gates at time t (forward
        time order for both halves).  Returns (rows, h_final) with rows[t]
        the fused (batch, DH) layer output at time t.
        """
        if num_dir == 2:
            # Step-s gate input: fwd half from time s, rev half from seq-1-s.
            # Independent of the carried h -> off the serial critical path.
            g_steps = [jnp.where(is_fwd_lane, gih_rows[s],
                                 gih_rows[seq - 1 - s]) for s in range(seq)]
        else:
            g_steps = gih_rows

        h = h0
        h_steps = [None] * seq
        for s in range(seq):            # fully static unroll (seq is small)
            gates = g_steps[s] + jnp.dot(h, w_blk,
                                         preferred_element_type=jnp.float32)
            h = act(gates)
            h_steps[s] = h

        if num_dir == 2:
            # Undo the reverse chain's time reversal: output row t takes the
            # fwd half from step t and the rev half from step seq-1-t.
            rows = [jnp.where(is_fwd_lane, h_steps[t], h_steps[seq - 1 - t])
                    for t in range(seq)]
        else:
            rows = h_steps
        return rows, h

    # rows: layer input rows (gates for layer 0, activations afterwards).
    rows = [gih0_ref[s] for s in range(seq)]
    for layer in range(num_layers):
        if layer > 0:
            # Upper-layer input projection stays entirely in VMEM/vregs:
            # no HBM round-trip of inter-layer activations; bias added once.
            w_up = wih_up_ref[layer - 1]
            b_up = b_up_ref[layer - 1]
            rows = [jnp.dot(r, w_up, preferred_element_type=jnp.float32) + b_up
                    for r in rows]
        rows, h_fin = run_layer(rows, h0_ref[layer], whh_ref[layer])
        hn_ref[layer] = h_fin.astype(hn_ref.dtype)

    for t in range(seq):                # static, full-lane-width (DH) stores
        out_ref[t] = rows[t].astype(out_ref.dtype)


def rnn_forward(x, hx, params, *, num_layers, bidirectional, nonlinearity,
                batch_first):
    """Multi-layer (optionally bidirectional) RNN forward, one Pallas call.

    params[idx] = (w_ih_t, w_hh_t, b) for idx = layer * num_dir + direction,
    with w_ih_t: (layer_in, H), w_hh_t: (H, H), b: (1, H) = bias_ih + bias_hh.
    Returns (output, h_n) with torch nn.RNN shape conventions.
    """
    if batch_first:
        x = jnp.transpose(x, (1, 0, 2))
    seq, batch, _ = x.shape
    num_dir = 2 if bidirectional else 1
    hidden = hx.shape[-1]
    DH = num_dir * hidden
    f32 = jnp.float32

    # Hoisted layer-0 input projection: one batched matmul, bias folded in.
    w_ih0 = jnp.stack([params[d][0] for d in range(num_dir)])          # (D,in,H)
    b0 = jnp.concatenate([params[d][2] for d in range(num_dir)], -1)   # (1,DH)
    gih0 = (jnp.einsum("sbi,dih->sbdh", x, w_ih0).reshape(seq, batch, DH)
            + b0).astype(f32)

    # Per-layer block-diagonal W_hh (both directions fused).
    whh_blocks = []
    for layer in range(num_layers):
        base = layer * num_dir
        if num_dir == 2:
            wf, wr = params[base][1], params[base + 1][1]
            z = jnp.zeros_like(wf)
            blk = jnp.concatenate(
                [jnp.concatenate([wf, z], axis=1),
                 jnp.concatenate([z, wr], axis=1)], axis=0)
        else:
            blk = params[base][1]
        whh_blocks.append(blk)
    whh = jnp.stack(whh_blocks).astype(f32)                            # (L,DH,DH)

    # Upper-layer input projections (consumed inside the kernel).
    wih_up, b_up = [], []
    for layer in range(1, num_layers):
        base = layer * num_dir
        wih_up.append(jnp.concatenate(
            [params[base + d][0] for d in range(num_dir)], axis=1))    # (DH,DH)
        b_up.append(jnp.concatenate(
            [params[base + d][2] for d in range(num_dir)], axis=-1))   # (1,DH)
    if not wih_up:   # keep the pallas argument list static for num_layers == 1
        wih_up.append(jnp.zeros((DH, DH), f32))
        b_up.append(jnp.zeros((1, DH), f32))
    wih_up = jnp.stack(wih_up).astype(f32)
    b_up = jnp.stack(b_up).astype(f32)

    # Fused initial hidden: (L, B, DH) = [h_fwd | h_rev].
    h0 = (hx.reshape(num_layers, num_dir, batch, hidden)
            .transpose(0, 2, 1, 3).reshape(num_layers, batch, DH)).astype(f32)

    vmem = pl.BlockSpec(memory_space=pltpu.MemorySpace.VMEM)
    out, hn = pl.pallas_call(
        functools.partial(_fused_rnn_kernel, num_layers=num_layers,
                          hidden=hidden, num_dir=num_dir,
                          nonlinearity=nonlinearity),
        out_shape=(jax.ShapeDtypeStruct((seq, batch, DH), x.dtype),
                   jax.ShapeDtypeStruct((num_layers, batch, DH), x.dtype)),
        in_specs=[vmem] * 5,
        out_specs=(vmem, vmem),
    )(gih0, h0, whh, wih_up, b_up)

    h_n = (hn.reshape(num_layers, batch, num_dir, hidden)
             .transpose(0, 2, 1, 3)
             .reshape(num_layers * num_dir, batch, hidden))
    output = out
    if batch_first:
        output = jnp.transpose(output, (1, 0, 2))
    # TODO(synk): inter-layer dropout omitted (dropout=0.0 / eval mode).
    return output, h_n


def init_rnn_params(key, *, input_size, hidden_size, num_layers, bidirectional):
    """Deterministic init mirroring RNN.reset_parameters():
       weight_ih ~ U(-stdv, stdv), weight_hh orthogonal, bias_ih ~ U, bias_hh = 0."""
    num_dir = 2 if bidirectional else 1
    stdv = 1.0 / math.sqrt(hidden_size)
    params = []
    for layer in range(num_layers):
        layer_in = input_size if layer == 0 else hidden_size * num_dir
        for _ in range(num_dir):
            key, k1, k2, k3 = jax.random.split(key, 4)
            w_ih = jax.random.uniform(k1, (hidden_size, layer_in),
                                      jnp.float32, -stdv, stdv)
            a = jax.random.normal(k2, (hidden_size, hidden_size), jnp.float32)
            q, r = jnp.linalg.qr(a)
            w_hh = q * jnp.sign(jnp.diag(r))[None, :]
            bias_ih = jax.random.uniform(k3, (hidden_size,), jnp.float32,
                                         -stdv, stdv)
            bias_hh = jnp.zeros((hidden_size,), jnp.float32)
            b = (bias_ih + bias_hh).reshape(1, hidden_size)
            params.append((w_ih.T, w_hh.T, b))
    return params


def rnn_forward_ref(x, hx, params, *, num_layers, bidirectional, nonlinearity,
                    batch_first):
    """Pure-JAX reference matching the torch module's python loops."""
    act = jnp.tanh if nonlinearity == "tanh" else (lambda v: jnp.maximum(v, 0.0))
    if batch_first:
        x = jnp.transpose(x, (1, 0, 2))
    seq = x.shape[0]
    num_dir = 2 if bidirectional else 1
    h_n_list = []
    layer_input = x
    for layer in range(num_layers):
        dir_outputs = []
        for direction in range(num_dir):
            idx = layer * num_dir + direction
            w_ih_t, w_hh_t, b = params[idx]
            h_t = hx[idx]
            outs = []
            t_order = range(seq) if direction == 0 else reversed(range(seq))
            for t in t_order:
                gates = layer_input[t] @ w_ih_t + h_t @ w_hh_t + b
                h_t = act(gates)
                outs.append(h_t)
            h_n_list.append(h_t)
            if direction == 1:
                outs = list(reversed(outs))
            dir_outputs.append(jnp.stack(outs, axis=0))
        layer_input = (jnp.concatenate(dir_outputs, axis=2)
                       if num_dir == 2 else dir_outputs[0])
    output = layer_input
    h_n = jnp.stack(h_n_list, axis=0)
    if batch_first:
        output = jnp.transpose(output, (1, 0, 2))
    return output, h_n


if __name__ == "__main__":
    # Module config: RNN(input_size=4, hidden_size=32, num_layers=2,
    #                    nonlinearity='tanh', bias=True, batch_first=False,
    #                    dropout=0.0, bidirectional=True)
    input_size, hidden_size, num_layers = 4, 32, 2
    bidirectional, nonlinearity, batch_first = True, "tanh", False
    seq_len, batch = 8, 2
    num_dir = 2 if bidirectional else 1

    key = jax.random.PRNGKey(0)
    kx, kh, kp = jax.random.split(key, 3)
    x = jax.random.normal(kx, (seq_len, batch, input_size), jnp.float32)
    hx = jnp.zeros((num_layers * num_dir, batch, hidden_size), jnp.float32)

    params = init_rnn_params(kp, input_size=input_size, hidden_size=hidden_size,
                             num_layers=num_layers, bidirectional=bidirectional)

    fwd = jax.jit(functools.partial(
        rnn_forward, num_layers=num_layers, bidirectional=bidirectional,
        nonlinearity=nonlinearity, batch_first=batch_first))

    out, h_n = fwd(x, hx, params)
    out = jax.block_until_ready(out)
    h_n = jax.block_until_ready(h_n)

    out_ref, h_n_ref = rnn_forward_ref(x, hx, params, num_layers=num_layers,
                                       bidirectional=bidirectional,
                                       nonlinearity=nonlinearity,
                                       batch_first=batch_first)

    assert out.shape == (seq_len, batch, hidden_size * num_dir)
    assert h_n.shape == (num_layers * num_dir, batch, hidden_size)
    assert jnp.allclose(out, out_ref, atol=1e-5, rtol=1e-5)
    assert jnp.allclose(h_n, h_n_ref, atol=1e-5, rtol=1e-5)
    print("KERNEL_OK")
</pallas_src>

<mosaic_0001>
module attributes {stable_mosaic.version = 11 : i64} {
  func.func @_fused_rnn_kernel(%arg0: memref<8x2x64xf32, #tpu.memory_space<vmem>>, %arg1: memref<2x2x64xf32, #tpu.memory_space<vmem>>, %arg2: memref<2x64x64xf32, #tpu.memory_space<vmem>>, %arg3: memref<1x64x64xf32, #tpu.memory_space<vmem>>, %arg4: memref<1x1x64xf32, #tpu.memory_space<vmem>>, %arg5: memref<8x2x64xf32, #tpu.memory_space<vmem>>, %arg6: memref<2x2x64xf32, #tpu.memory_space<vmem>>) attributes {dimension_semantics = [], scalar_prefetch = 0 : i64, scratch_operands = 0 : i64, tpu.core_type = #tpu.core_type<tc>} {
    %0 = tpu.iota {dimensions = array<i32: 1>} : vector<2x64xi32>
    %c32_i32 = arith.constant 32 : i32
    %1 = vector.broadcast %c32_i32 : i32 to vector<2x64xi32>
    %2 = arith.cmpi slt, %0, %1 : vector<2x64xi32>
    %c0 = arith.constant 0 : index
    %c0_0 = arith.constant 0 : index
    %c0_1 = arith.constant 0 : index
    %3 = vector.load %arg0[%c0, %c0_0, %c0_1] : memref<8x2x64xf32, #tpu.memory_space<vmem>>, vector<1x2x64xf32>
    %4 = vector.shape_cast %3 : vector<1x2x64xf32> to vector<2x64xf32>
    %c1 = arith.constant 1 : index
    %c0_2 = arith.constant 0 : index
    %c0_3 = arith.constant 0 : index
    %5 = vector.load %arg0[%c1, %c0_2, %c0_3] : memref<8x2x64xf32, #tpu.memory_space<vmem>>, vector<1x2x64xf32>
    %6 = vector.shape_cast %5 : vector<1x2x64xf32> to vector<2x64xf32>
    %c2 = arith.constant 2 : index
    %c0_4 = arith.constant 0 : index
    %c0_5 = arith.constant 0 : index
    %7 = vector.load %arg0[%c2, %c0_4, %c0_5] : memref<8x2x64xf32, #tpu.memory_space<vmem>>, vector<1x2x64xf32>
    %8 = vector.shape_cast %7 : vector<1x2x64xf32> to vector<2x64xf32>
    %c3 = arith.constant 3 : index
    %c0_6 = arith.constant 0 : index
    %c0_7 = arith.constant 0 : index
    %9 = vector.load %arg0[%c3, %c0_6, %c0_7] : memref<8x2x64xf32, #tpu.memory_space<vmem>>, vector<1x2x64xf32>
    %10 = vector.shape_cast %9 : vector<1x2x64xf32> to vector<2x64xf32>
    %c4 = arith.constant 4 : index
    %c0_8 = arith.constant 0 : index
    %c0_9 = arith.constant 0 : index
    %11 = vector.load %arg0[%c4, %c0_8, %c0_9] : memref<8x2x64xf32, #tpu.memory_space<vmem>>, vector<1x2x64xf32>
    %12 = vector.shape_cast %11 : vector<1x2x64xf32> to vector<2x64xf32>
    %c5 = arith.constant 5 : index
    %c0_10 = arith.constant 0 : index
    %c0_11 = arith.constant 0 : index
    %13 = vector.load %arg0[%c5, %c0_10, %c0_11] : memref<8x2x64xf32, #tpu.memory_space<vmem>>, vector<1x2x64xf32>
    %14 = vector.shape_cast %13 : vector<1x2x64xf32> to vector<2x64xf32>
    %c6 = arith.constant 6 : index
    %c0_12 = arith.constant 0 : index
    %c0_13 = arith.constant 0 : index
    %15 = vector.load %arg0[%c6, %c0_12, %c0_13] : memref<8x2x64xf32, #tpu.memory_space<vmem>>, vector<1x2x64xf32>
    %16 = vector.shape_cast %15 : vector<1x2x64xf32> to vector<2x64xf32>
    %c7 = arith.constant 7 : index
    %c0_14 = arith.constant 0 : index
    %c0_15 = arith.constant 0 : index
    %17 = vector.load %arg0[%c7, %c0_14, %c0_15] : memref<8x2x64xf32, #tpu.memory_space<vmem>>, vector<1x2x64xf32>
    %18 = vector.shape_cast %17 : vector<1x2x64xf32> to vector<2x64xf32>
    %c0_16 = arith.constant 0 : index
    %c0_17 = arith.constant 0 : index
    %c0_18 = arith.constant 0 : index
    %19 = vector.load %arg1[%c0_16, %c0_17, %c0_18] : memref<2x2x64xf32, #tpu.memory_space<vmem>>, vector<1x2x64xf32>
    %20 = vector.shape_cast %19 : vector<1x2x64xf32> to vector<2x64xf32>
    %c0_19 = arith.constant 0 : index
    %c0_20 = arith.constant 0 : index
    %c0_21 = arith.constant 0 : index
    %21 = vector.load %arg2[%c0_19, %c0_20, %c0_21] : memref<2x64x64xf32, #tpu.memory_space<vmem>>, vector<1x64x64xf32>
    %22 = vector.shape_cast %21 : vector<1x64x64xf32> to vector<64x64xf32>
    %23 = arith.select %2, %4, %18 : vector<2x64xi1>, vector<2x64xf32>
    %24 = arith.select %2, %6, %16 : vector<2x64xi1>, vector<2x64xf32>
    %25 = arith.select %2, %8, %14 : vector<2x64xi1>, vector<2x64xf32>
    %26 = arith.select %2, %10, %12 : vector<2x64xi1>, vector<2x64xf32>
    %27 = arith.select %2, %12, %10 : vector<2x64xi1>, vector<2x64xf32>
    %28 = arith.select %2, %14, %8 : vector<2x64xi1>, vector<2x64xf32>
    %29 = arith.select %2, %16, %6 : vector<2x64xi1>, vector<2x64xf32>
    %30 = arith.select %2, %18, %4 : vector<2x64xi1>, vector<2x64xf32>
    %cst = arith.constant dense<0.000000e+00> : vector<2x64xf32>
    %31 = tpu.matmul %20, %22, %cst {dimension_numbers = #tpu.dot_dimension_numbers<[1], [0], [0], [1], [0, 0, 1, 1], [], []>} : vector<2x64xf32>, vector<64x64xf32>, vector<2x64xf32> -> vector<2x64xf32>
    %32 = arith.addf %23, %31 : vector<2x64xf32>
    %33 = math.tanh %32 : vector<2x64xf32>
    %cst_22 = arith.constant dense<0.000000e+00> : vector<2x64xf32>
    %34 = tpu.matmul %33, %22, %cst_22 {dimension_numbers = #tpu.dot_dimension_numbers<[1], [0], [0], [1], [0, 0, 1, 1], [], []>} : vector<2x64xf32>, vector<64x64xf32>, vector<2x64xf32> -> vector<2x64xf32>
    %35 = arith.addf %24, %34 : vector<2x64xf32>
    %36 = math.tanh %35 : vector<2x64xf32>
    %cst_23 = arith.constant dense<0.000000e+00> : vector<2x64xf32>
    %37 = tpu.matmul %36, %22, %cst_23 {dimension_numbers = #tpu.dot_dimension_numbers<[1], [0], [0], [1], [0, 0, 1, 1], [], []>} : vector<2x64xf32>, vector<64x64xf32>, vector<2x64xf32> -> vector<2x64xf32>
    %38 = arith.addf %25, %37 : vector<2x64xf32>
    %39 = math.tanh %38 : vector<2x64xf32>
    %cst_24 = arith.constant dense<0.000000e+00> : vector<2x64xf32>
    %40 = tpu.matmul %39, %22, %cst_24 {dimension_numbers = #tpu.dot_dimension_numbers<[1], [0], [0], [1], [0, 0, 1, 1], [], []>} : vector<2x64xf32>, vector<64x64xf32>, vector<2x64xf32> -> vector<2x64xf32>
    %41 = arith.addf %26, %40 : vector<2x64xf32>
    %42 = math.tanh %41 : vector<2x64xf32>
    %cst_25 = arith.constant dense<0.000000e+00> : vector<2x64xf32>
    %43 = tpu.matmul %42, %22, %cst_25 {dimension_numbers = #tpu.dot_dimension_numbers<[1], [0], [0], [1], [0, 0, 1, 1], [], []>} : vector<2x64xf32>, vector<64x64xf32>, vector<2x64xf32> -> vector<2x64xf32>
    %44 = arith.addf %27, %43 : vector<2x64xf32>
    %45 = math.tanh %44 : vector<2x64xf32>
    %cst_26 = arith.constant dense<0.000000e+00> : vector<2x64xf32>
    %46 = tpu.matmul %45, %22, %cst_26 {dimension_numbers = #tpu.dot_dimension_numbers<[1], [0], [0], [1], [0, 0, 1, 1], [], []>} : vector<2x64xf32>, vector<64x64xf32>, vector<2x64xf32> -> vector<2x64xf32>
    %47 = arith.addf %28, %46 : vector<2x64xf32>
    %48 = math.tanh %47 : vector<2x64xf32>
    %cst_27 = arith.constant dense<0.000000e+00> : vector<2x64xf32>
    %49 = tpu.matmul %48, %22, %cst_27 {dimension_numbers = #tpu.dot_dimension_numbers<[1], [0], [0], [1], [0, 0, 1, 1], [], []>} : vector<2x64xf32>, vector<64x64xf32>, vector<2x64xf32> -> vector<2x64xf32>
    %50 = arith.addf %29, %49 : vector<2x64xf32>
    %51 = math.tanh %50 : vector<2x64xf32>
    %cst_28 = arith.constant dense<0.000000e+00> : vector<2x64xf32>
    %52 = tpu.matmul %51, %22, %cst_28 {dimension_numbers = #tpu.dot_dimension_numbers<[1], [0], [0], [1], [0, 0, 1, 1], [], []>} : vector<2x64xf32>, vector<64x64xf32>, vector<2x64xf32> -> vector<2x64xf32>
    %53 = arith.addf %30, %52 : vector<2x64xf32>
    %54 = math.tanh %53 : vector<2x64xf32>
    %55 = arith.select %2, %33, %54 : vector<2x64xi1>, vector<2x64xf32>
    %56 = arith.select %2, %36, %51 : vector<2x64xi1>, vector<2x64xf32>
    %57 = arith.select %2, %39, %48 : vector<2x64xi1>, vector<2x64xf32>
    %58 = arith.select %2, %42, %45 : vector<2x64xi1>, vector<2x64xf32>
    %59 = arith.select %2, %45, %42 : vector<2x64xi1>, vector<2x64xf32>
    %60 = arith.select %2, %48, %39 : vector<2x64xi1>, vector<2x64xf32>
    %61 = arith.select %2, %51, %36 : vector<2x64xi1>, vector<2x64xf32>
    %62 = arith.select %2, %54, %33 : vector<2x64xi1>, vector<2x64xf32>
    %c0_29 = arith.constant 0 : index
    %c0_30 = arith.constant 0 : index
    %c0_31 = arith.constant 0 : index
    %63 = vector.load %arg6[%c0_29, %c0_30, %c0_31] : memref<2x2x64xf32, #tpu.memory_space<vmem>>, vector<1x2x64xf32>
    %64 = vector.shape_cast %63 : vector<1x2x64xf32> to vector<2x64xf32>
    %65 = vector.shape_cast %54 : vector<2x64xf32> to vector<1x2x64xf32>
    tpu.vector_store %arg6[%c0_29, %c0_30, %c0_31], %65 {strides = array<i32>} : memref<2x2x64xf32, #tpu.memory_space<vmem>>, vector<1x2x64xf32>,
    %c0_32 = arith.constant 0 : index
    %c0_33 = arith.constant 0 : index
    %c0_34 = arith.constant 0 : index
    %66 = vector.load %arg3[%c0_32, %c0_33, %c0_34] : memref<1x64x64xf32, #tpu.memory_space<vmem>>, vector<1x64x64xf32>
    %67 = vector.shape_cast %66 : vector<1x64x64xf32> to vector<64x64xf32>
    %c0_35 = arith.constant 0 : index
    %c0_36 = arith.constant 0 : index
    %c0_37 = arith.constant 0 : index
    %68 = vector.load %arg4[%c0_35, %c0_36, %c0_37] : memref<1x1x64xf32, #tpu.memory_space<vmem>>, vector<1x1x64xf32>
    %69 = vector.shape_cast %68 : vector<1x1x64xf32> to vector<1x64xf32>
    %cst_38 = arith.constant dense<0.000000e+00> : vector<2x64xf32>
    %70 = tpu.matmul %55, %67, %cst_38 {dimension_numbers = #tpu.dot_dimension_numbers<[1], [0], [0], [1], [0, 0, 1, 1], [], []>} : vector<2x64xf32>, vector<64x64xf32>, vector<2x64xf32> -> vector<2x64xf32>
    %71 = vector.broadcast %69 : vector<1x64xf32> to vector<2x64xf32>
    %72 = arith.addf %70, %71 : vector<2x64xf32>
    %cst_39 = arith.constant dense<0.000000e+00> : vector<2x64xf32>
    %73 = tpu.matmul %56, %67, %cst_39 {dimension_numbers = #tpu.dot_dimension_numbers<[1], [0], [0], [1], [0, 0, 1, 1], [], []>} : vector<2x64xf32>, vector<64x64xf32>, vector<2x64xf32> -> vector<2x64xf32>
    %74 = vector.broadcast %69 : vector<1x64xf32> to vector<2x64xf32>
    %75 = arith.addf %73, %74 : vector<2x64xf32>
    %cst_40 = arith.constant dense<0.000000e+00> : vector<2x64xf32>
    %76 = tpu.matmul %57, %67, %cst_40 {dimension_numbers = #tpu.dot_dimension_numbers<[1], [0], [0], [1], [0, 0, 1, 1], [], []>} : vector<2x64xf32>, vector<64x64xf32>, vector<2x64xf32> -> vector<2x64xf32>
    %77 = vector.broadcast %69 : vector<1x64xf32> to vector<2x64xf32>
    %78 = arith.addf %76, %77 : vector<2x64xf32>
    %cst_41 = arith.constant dense<0.000000e+00> : vector<2x64xf32>
    %79 = tpu.matmul %58, %67, %cst_41 {dimension_numbers = #tpu.dot_dimension_numbers<[1], [0], [0], [1], [0, 0, 1, 1], [], []>} : vector<2x64xf32>, vector<64x64xf32>, vector<2x64xf32> -> vector<2x64xf32>
    %80 = vector.broadcast %69 : vector<1x64xf32> to vector<2x64xf32>
    %81 = arith.addf %79, %80 : vector<2x64xf32>
    %cst_42 = arith.constant dense<0.000000e+00> : vector<2x64xf32>
    %82 = tpu.matmul %59, %67, %cst_42 {dimension_numbers = #tpu.dot_dimension_numbers<[1], [0], [0], [1], [0, 0, 1, 1], [], []>} : vector<2x64xf32>, vector<64x64xf32>, vector<2x64xf32> -> vector<2x64xf32>
    %83 = vector.broadcast %69 : vector<1x64xf32> to vector<2x64xf32>
    %84 = arith.addf %82, %83 : vector<2x64xf32>
    %cst_43 = arith.constant dense<0.000000e+00> : vector<2x64xf32>
    %85 = tpu.matmul %60, %67, %cst_43 {dimension_numbers = #tpu.dot_dimension_numbers<[1], [0], [0], [1], [0, 0, 1, 1], [], []>} : vector<2x64xf32>, vector<64x64xf32>, vector<2x64xf32> -> vector<2x64xf32>
    %86 = vector.broadcast %69 : vector<1x64xf32> to vector<2x64xf32>
    %87 = arith.addf %85, %86 : vector<2x64xf32>
    %cst_44 = arith.constant dense<0.000000e+00> : vector<2x64xf32>
    %88 = tpu.matmul %61, %67, %cst_44 {dimension_numbers = #tpu.dot_dimension_numbers<[1], [0], [0], [1], [0, 0, 1, 1], [], []>} : vector<2x64xf32>, vector<64x64xf32>, vector<2x64xf32> -> vector<2x64xf32>
    %89 = vector.broadcast %69 : vector<1x64xf32> to vector<2x64xf32>
    %90 = arith.addf %88, %89 : vector<2x64xf32>
    %cst_45 = arith.constant dense<0.000000e+00> : vector<2x64xf32>
    %91 = tpu.matmul %62, %67, %cst_45 {dimension_numbers = #tpu.dot_dimension_numbers<[1], [0], [0], [1], [0, 0, 1, 1], [], []>} : vector<2x64xf32>, vector<64x64xf32>, vector<2x64xf32> -> vector<2x64xf32>
    %92 = vector.broadcast %69 : vector<1x64xf32> to vector<2x64xf32>
    %93 = arith.addf %91, %92 : vector<2x64xf32>
    %c1_46 = arith.constant 1 : index
    %c0_47 = arith.constant 0 : index
    %c0_48 = arith.constant 0 : index
    %94 = vector.load %arg1[%c1_46, %c0_47, %c0_48] : memref<2x2x64xf32, #tpu.memory_space<vmem>>, vector<1x2x64xf32>
    %95 = vector.shape_cast %94 : vector<1x2x64xf32> to vector<2x64xf32>
    %c1_49 = arith.constant 1 : index
    %c0_50 = arith.constant 0 : index
    %c0_51 = arith.constant 0 : index
    %96 = vector.load %arg2[%c1_49, %c0_50, %c0_51] : memref<2x64x64xf32, #tpu.memory_space<vmem>>, vector<1x64x64xf32>
    %97 = vector.shape_cast %96 : vector<1x64x64xf32> to vector<64x64xf32>
    %98 = arith.select %2, %72, %93 : vector<2x64xi1>, vector<2x64xf32>
    %99 = arith.select %2, %75, %90 : vector<2x64xi1>, vector<2x64xf32>
    %100 = arith.select %2, %78, %87 : vector<2x64xi1>, vector<2x64xf32>
    %101 = arith.select %2, %81, %84 : vector<2x64xi1>, vector<2x64xf32>
    %102 = arith.select %2, %84, %81 : vector<2x64xi1>, vector<2x64xf32>
    %103 = arith.select %2, %87, %78 : vector<2x64xi1>, vector<2x64xf32>
    %104 = arith.select %2, %90, %75 : vector<2x64xi1>, vector<2x64xf32>
    %105 = arith.select %2, %93, %72 : vector<2x64xi1>, vector<2x64xf32>
    %cst_52 = arith.constant dense<0.000000e+00> : vector<2x64xf32>
    %106 = tpu.matmul %95, %97, %cst_52 {dimension_numbers = #tpu.dot_dimension_numbers<[1], [0], [0], [1], [0, 0, 1, 1], [], []>} : vector<2x64xf32>, vector<64x64xf32>, vector<2x64xf32> -> vector<2x64xf32>
    %107 = arith.addf %98, %106 : vector<2x64xf32>
    %108 = math.tanh %107 : vector<2x64xf32>
    %cst_53 = arith.constant dense<0.000000e+00> : vector<2x64xf32>
    %109 = tpu.matmul %108, %97, %cst_53 {dimension_numbers = #tpu.dot_dimension_numbers<[1], [0], [0], [1], [0, 0, 1, 1], [], []>} : vector<2x64xf32>, vector<64x64xf32>, vector<2x64xf32> -> vector<2x64xf32>
    %110 = arith.addf %99, %109 : vector<2x64xf32>
    %111 = math.tanh %110 : vector<2x64xf32>
    %cst_54 = arith.constant dense<0.000000e+00> : vector<2x64xf32>
    %112 = tpu.matmul %111, %97, %cst_54 {dimension_numbers = #tpu.dot_dimension_numbers<[1], [0], [0], [1], [0, 0, 1, 1], [], []>} : vector<2x64xf32>, vector<64x64xf32>, vector<2x64xf32> -> vector<2x64xf32>
    %113 = arith.addf %100, %112 : vector<2x64xf32>
    %114 = math.tanh %113 : vector<2x64xf32>
    %cst_55 = arith.constant dense<0.000000e+00> : vector<2x64xf32>
    %115 = tpu.matmul %114, %97, %cst_55 {dimension_numbers = #tpu.dot_dimension_numbers<[1], [0], [0], [1], [0, 0, 1, 1], [], []>} : vector<2x64xf32>, vector<64x64xf32>, vector<2x64xf32> -> vector<2x64xf32>
    %116 = arith.addf %101, %115 : vector<2x64xf32>
    %117 = math.tanh %116 : vector<2x64xf32>
    %cst_56 = arith.constant dense<0.000000e+00> : vector<2x64xf32>
    %118 = tpu.matmul %117, %97, %cst_56 {dimension_numbers = #tpu.dot_dimension_numbers<[1], [0], [0], [1], [0, 0, 1, 1], [], []>} : vector<2x64xf32>, vector<64x64xf32>, vector<2x64xf32> -> vector<2x64xf32>
    %119 = arith.addf %102, %118 : vector<2x64xf32>
    %120 = math.tanh %119 : vector<2x64xf32>
    %cst_57 = arith.constant dense<0.000000e+00> : vector<2x64xf32>
    %121 = tpu.matmul %120, %97, %cst_57 {dimension_numbers = #tpu.dot_dimension_numbers<[1], [0], [0], [1], [0, 0, 1, 1], [], []>} : vector<2x64xf32>, vector<64x64xf32>, vector<2x64xf32> -> vector<2x64xf32>
    %122 = arith.addf %103, %121 : vector<2x64xf32>
    %123 = math.tanh %122 : vector<2x64xf32>
    %cst_58 = arith.constant dense<0.000000e+00> : vector<2x64xf32>
    %124 = tpu.matmul %123, %97, %cst_58 {dimension_numbers = #tpu.dot_dimension_numbers<[1], [0], [0], [1], [0, 0, 1, 1], [], []>} : vector<2x64xf32>, vector<64x64xf32>, vector<2x64xf32> -> vector<2x64xf32>
    %125 = arith.addf %104, %124 : vector<2x64xf32>
    %126 = math.tanh %125 : vector<2x64xf32>
    %cst_59 = arith.constant dense<0.000000e+00> : vector<2x64xf32>
    %127 = tpu.matmul %126, %97, %cst_59 {dimension_numbers = #tpu.dot_dimension_numbers<[1], [0], [0], [1], [0, 0, 1, 1], [], []>} : vector<2x64xf32>, vector<64x64xf32>, vector<2x64xf32> -> vector<2x64xf32>
    %128 = arith.addf %105, %127 : vector<2x64xf32>
    %129 = math.tanh %128 : vector<2x64xf32>
    %130 = arith.select %2, %108, %129 : vector<2x64xi1>, vector<2x64xf32>
    %131 = arith.select %2, %111, %126 : vector<2x64xi1>, vector<2x64xf32>
    %132 = arith.select %2, %114, %123 : vector<2x64xi1>, vector<2x64xf32>
    %133 = arith.select %2, %117, %120 : vector<2x64xi1>, vector<2x64xf32>
    %134 = arith.select %2, %120, %117 : vector<2x64xi1>, vector<2x64xf32>
    %135 = arith.select %2, %123, %114 : vector<2x64xi1>, vector<2x64xf32>
    %136 = arith.select %2, %126, %111 : vector<2x64xi1>, vector<2x64xf32>
    %137 = arith.select %2, %129, %108 : vector<2x64xi1>, vector<2x64xf32>
    %c1_60 = arith.constant 1 : index
    %c0_61 = arith.constant 0 : index
    %c0_62 = arith.constant 0 : index
    %138 = vector.load %arg6[%c1_60, %c0_61, %c0_62] : memref<2x2x64xf32, #tpu.memory_space<vmem>>, vector<1x2x64xf32>
    %139 = vector.shape_cast %138 : vector<1x2x64xf32> to vector<2x64xf32>
    %140 = vector.shape_cast %129 : vector<2x64xf32> to vector<1x2x64xf32>
    tpu.vector_store %arg6[%c1_60, %c0_61, %c0_62], %140 {strides = array<i32>} : memref<2x2x64xf32, #tpu.memory_space<vmem>>, vector<1x2x64xf32>,
    %c0_63 = arith.constant 0 : index
    %c0_64 = arith.constant 0 : index
    %c0_65 = arith.constant 0 : index
    %141 = vector.load %arg5[%c0_63, %c0_64, %c0_65] : memref<8x2x64xf32, #tpu.memory_space<vmem>>, vector<1x2x64xf32>
    %142 = vector.shape_cast %141 : vector<1x2x64xf32> to vector<2x64xf32>
    %143 = vector.shape_cast %130 : vector<2x64xf32> to vector<1x2x64xf32>
    tpu.vector_store %arg5[%c0_63, %c0_64, %c0_65], %143 {strides = array<i32>} : memref<8x2x64xf32, #tpu.memory_space<vmem>>, vector<1x2x64xf32>,
    %c1_66 = arith.constant 1 : index
    %c0_67 = arith.constant 0 : index
    %c0_68 = arith.constant 0 : index
    %144 = vector.load %arg5[%c1_66, %c0_67, %c0_68] : memref<8x2x64xf32, #tpu.memory_space<vmem>>, vector<1x2x64xf32>
    %145 = vector.shape_cast %144 : vector<1x2x64xf32> to vector<2x64xf32>
    %146 = vector.shape_cast %131 : vector<2x64xf32> to vector<1x2x64xf32>
    tpu.vector_store %arg5[%c1_66, %c0_67, %c0_68], %146 {strides = array<i32>} : memref<8x2x64xf32, #tpu.memory_space<vmem>>, vector<1x2x64xf32>,
    %c2_69 = arith.constant 2 : index
    %c0_70 = arith.constant 0 : index
    %c0_71 = arith.constant 0 : index
    %147 = vector.load %arg5[%c2_69, %c0_70, %c0_71] : memref<8x2x64xf32, #tpu.memory_space<vmem>>, vector<1x2x64xf32>
    %148 = vector.shape_cast %147 : vector<1x2x64xf32> to vector<2x64xf32>
    %149 = vector.shape_cast %132 : vector<2x64xf32> to vector<1x2x64xf32>
    tpu.vector_store %arg5[%c2_69, %c0_70, %c0_71], %149 {strides = array<i32>} : memref<8x2x64xf32, #tpu.memory_space<vmem>>, vector<1x2x64xf32>,
    %c3_72 = arith.constant 3 : index
    %c0_73 = arith.constant 0 : index
    %c0_74 = arith.constant 0 : index
    %150 = vector.load %arg5[%c3_72, %c0_73, %c0_74] : memref<8x2x64xf32, #tpu.memory_space<vmem>>, vector<1x2x64xf32>
    %151 = vector.shape_cast %150 : vector<1x2x64xf32> to vector<2x64xf32>
    %152 = vector.shape_cast %133 : vector<2x64xf32> to vector<1x2x64xf32>
    tpu.vector_store %arg5[%c3_72, %c0_73, %c0_74], %152 {strides = array<i32>} : memref<8x2x64xf32, #tpu.memory_space<vmem>>, vector<1x2x64xf32>,
    %c4_75 = arith.constant 4 : index
    %c0_76 = arith.constant 0 : index
    %c0_77 = arith.constant 0 : index
    %153 = vector.load %arg5[%c4_75, %c0_76, %c0_77] : memref<8x2x64xf32, #tpu.memory_space<vmem>>, vector<1x2x64xf32>
    %154 = vector.shape_cast %153 : vector<1x2x64xf32> to vector<2x64xf32>
    %155 = vector.shape_cast %134 : vector<2x64xf32> to vector<1x2x64xf32>
    tpu.vector_store %arg5[%c4_75, %c0_76, %c0_77], %155 {strides = array<i32>} : memref<8x2x64xf32, #tpu.memory_space<vmem>>, vector<1x2x64xf32>,
    %c5_78 = arith.constant 5 : index
    %c0_79 = arith.constant 0 : index
    %c0_80 = arith.constant 0 : index
    %156 = vector.load %arg5[%c5_78, %c0_79, %c0_80] : memref<8x2x64xf32, #tpu.memory_space<vmem>>, vector<1x2x64xf32>
    %157 = vector.shape_cast %156 : vector<1x2x64xf32> to vector<2x64xf32>
    %158 = vector.shape_cast %135 : vector<2x64xf32> to vector<1x2x64xf32>
    tpu.vector_store %arg5[%c5_78, %c0_79, %c0_80], %158 {strides = array<i32>} : memref<8x2x64xf32, #tpu.memory_space<vmem>>, vector<1x2x64xf32>,
    %c6_81 = arith.constant 6 : index
    %c0_82 = arith.constant 0 : index
    %c0_83 = arith.constant 0 : index
    %159 = vector.load %arg5[%c6_81, %c0_82, %c0_83] : memref<8x2x64xf32, #tpu.memory_space<vmem>>, vector<1x2x64xf32>
    %160 = vector.shape_cast %159 : vector<1x2x64xf32> to vector<2x64xf32>
    %161 = vector.shape_cast %136 : vector<2x64xf32> to vector<1x2x64xf32>
    tpu.vector_store %arg5[%c6_81, %c0_82, %c0_83], %161 {strides = array<i32>} : memref<8x2x64xf32, #tpu.memory_space<vmem>>, vector<1x2x64xf32>,
    %c7_84 = arith.constant 7 : index
    %c0_85 = arith.constant 0 : index
    %c0_86 = arith.constant 0 : index
    %162 = vector.load %arg5[%c7_84, %c0_85, %c0_86] : memref<8x2x64xf32, #tpu.memory_space<vmem>>, vector<1x2x64xf32>
    %163 = vector.shape_cast %162 : vector<1x2x64xf32> to vector<2x64xf32>
    %164 = vector.shape_cast %137 : vector<2x64xf32> to vector<1x2x64xf32>
    tpu.vector_store %arg5[%c7_84, %c0_85, %c0_86], %164 {strides = array<i32>} : memref<8x2x64xf32, #tpu.memory_space<vmem>>, vector<1x2x64xf32>,
    return
  }
}

</mosaic_0001>

<llo_original>
// kernel: rnn_forward.1
$region0: #{rnn_forward.1}
  #allocation0 [shape = 'u32[]', space=smem, size = 0x4, offset = 0x4, fixed_abs, tag = 'smem constant byte address 0x4 - core index']
  #allocation1 [shape = 'u32[144,128]{1,0:T(1,128)}', space=vmem, size = 0x12000, scoped, tag = 'internal scratch']
  %s0 = inlined_call_operand.vmem [shape: f32[8,2,64], index: 0, kind: input, shape index: {}]
  %s1 = inlined_call_operand.vmem [shape: f32[2,2,64], index: 1, kind: input, shape index: {}]
  %s2 = inlined_call_operand.vmem [shape: f32[2,64,64], index: 2, kind: input, shape index: {}]
  %s3 = inlined_call_operand.vmem [shape: f32[1,64,64], index: 3, kind: input, shape index: {}]
  %s4 = inlined_call_operand.vmem [shape: f32[1,1,64], index: 4, kind: input, shape index: {}]
  %s5 = inlined_call_operand.hbm [shape: f32[8,2,64], index: 5, kind: output, shape index: {0}]
  %s6 = inlined_call_operand.vmem [shape: f32[2,2,64], index: 6, kind: output, shape index: {1}]
  %7 = xla_tuple %s5, %s6
  %s8 = sld [smem:[#allocation0]]
  $region38: #{rnn_forward.1} parent=0
    _
  %s10 = ssub.s32 1, %s8
  %s11 = scalar_select 0, %s10, %s8
  $region1: #{rnn_forward.1} parent=0
    #allocation2 [shape = 'u8[8192]{0}', space=vmem, size = 0x2000, scoped, tag = 'output window, operand 0, single buffered']
    #allocation3 [shape = 's32[1]{0}', space=sflag, size = 0x4, scoped, tag = 'scoped memory for rnn_forward.1']
    %12 = vsyncpa [#allocation3], 0
    // Predicated region
    $region2: #{rnn_forward.1} parent=1 // pred_check
      _
    $region3: #{rnn_forward.1} parent=1 // pred_check_branch
      %14 = sbr.rel (0) target = $region5
    $region4: #{rnn_forward.1} parent=1 // pred_region
      _
    $region5: #{rnn_forward.1} parent=1 // pred_fallthru
      _
    // Predicated region
    $region6: #{rnn_forward.1} parent=1 // pred_check
      _
    $region7: #{rnn_forward.1} parent=1 // pred_check_branch
      %16 = sbr.rel (0) target = $region9
    $region8: #{rnn_forward.1} parent=1 // pred_region
      _
    $region9: #{rnn_forward.1} parent=1 // pred_fallthru
      _
    // Predicated region
    $region10: #{rnn_forward.1} parent=1 // pred_check
      _
    $region11: #{rnn_forward.1} parent=1 // pred_check_branch
      %18 = sbr.rel (0) target = $region13
    $region12: #{rnn_forward.1} parent=1 // pred_region
      _
    $region13: #{rnn_forward.1} parent=1 // pred_fallthru
      _
    // Predicated region
    $region14: #{rnn_forward.1} parent=1 // pred_check
      _
    $region15: #{rnn_forward.1} parent=1 // pred_check_branch
      %20 = sbr.rel (0) target = $region17
    $region16: #{rnn_forward.1} parent=1 // pred_region
      _
    $region17: #{rnn_forward.1} parent=1 // pred_fallthru
      _
    // Predicated region
    $region18: #{rnn_forward.1} parent=1 // pred_check
      _
    $region19: #{rnn_forward.1} parent=1 // pred_check_branch
      %22 = sbr.rel (0) target = $region21
    $region20: #{rnn_forward.1} parent=1 // pred_region
      _
    $region21: #{rnn_forward.1} parent=1 // pred_fallthru
      _
    %v23 = vlaneseq
    %v24 = vand.u32 %v23, 127
    %vm25 = vcmp.lt.s32.totalorder %v24, 32
    %v26 = vld [vmem:[%s0] sm:$0x3]
    %s27 = scalar_lea.vmem %s0, 2
    %v28 = vld [vmem:[%s27] sm:$0x3]
    %s29 = scalar_lea.vmem %s0, 4
    %v30 = vld [vmem:[%s29] sm:$0x3]
    %s31 = scalar_lea.vmem %s0, 6
    %v32 = vld [vmem:[%s31] sm:$0x3]
    %s33 = scalar_lea.vmem %s0, 8
    %v34 = vld [vmem:[%s33] sm:$0x3]
    %s35 = scalar_lea.vmem %s0, 10
    %v36 = vld [vmem:[%s35] sm:$0x3]
    %s37 = scalar_lea.vmem %s0, 12
    %v38 = vld [vmem:[%s37] sm:$0x3]
    %s39 = scalar_lea.vmem %s0, 14
    %v40 = vld [vmem:[%s39] sm:$0x3]
    %v41 = vld [vmem:[%s1] sm:$0x3]
    %v42 = vld [vmem:[%s2] sm:$0xff]
    %v43 = vld [vmem:[%s2 + $0x8] sm:$0xff]
    %v44 = vld [vmem:[%s2 + $0x10] sm:$0xff]
    %v45 = vld [vmem:[%s2 + $0x18] sm:$0xff]
    %v46 = vld [vmem:[%s2 + $0x20] sm:$0xff]
    %v47 = vld [vmem:[%s2 + $0x28] sm:$0xff]
    %v48 = vld [vmem:[%s2 + $0x30] sm:$0xff]
    %v49 = vld [vmem:[%s2 + $0x38] sm:$0xff]
    %v50 = vsel %vm25, %v26, %v40
    %v51 = vsel %vm25, %v28, %v38
    %v52 = vsel %vm25, %v30, %v36
    %v53 = vsel %vm25, %v32, %v34
    %v54 = vsel %vm25, %v34, %v32
    %v55 = vsel %vm25, %v36, %v30
    %v56 = vsel %vm25, %v38, %v28
    %v57 = vsel %vm25, %v40, %v26
    %vm58 = vcmask 523264
    %v60 = vsel %vm58, %v41, 0
    %62 = vmatprep.subr.mxu0 0.0
    %63 = vmatpush1.msra.mxu0 %v42
    %64 = vmatprep.subr.mxu0 0.0
    %65 = vmatpush1.msra.mxu0 %v43
    %66 = vmatprep.subr.mxu0 0.0
    %67 = vmatpush1.msra.mxu0 %v44
    %68 = vmatprep.subr.mxu0 0.0
    %69 = vmatpush1.msra.mxu0 %v45
    %70 = vmatprep.subr.mxu0 0.0
    %71 = vmatpush1.msra.mxu0 %v46
    %72 = vmatprep.subr.mxu0 0.0
    %73 = vmatpush1.msra.mxu0 %v47
    %74 = vmatprep.subr.mxu0 0.0
    %75 = vmatpush1.msra.mxu0 %v48
    %76 = vmatprep.subr.mxu0 0.0
    %77 = vmatpush1.msra.mxu0 %v49
    %78 = vmatprep.subr.mxu0 0.0
    %79 = vmatpush1.msra.mxu0 0.0
    %80 = vmatprep.subr.mxu0 0.0
    %81 = vmatpush1.msra.mxu0 0.0
    %82 = vmatprep.subr.mxu0 0.0
    %83 = vmatpush1.msra.mxu0 0.0
    %84 = vmatprep.subr.mxu0 0.0
    %85 = vmatpush1.msra.mxu0 0.0
    %86 = vmatprep.subr.mxu0 0.0
    %87 = vmatpush1.msra.mxu0 0.0
    %88 = vmatprep.subr.mxu0 0.0
    %89 = vmatpush1.msra.mxu0 0.0
    %90 = vmatprep.subr.mxu0 0.0
    %91 = vmatpush1.msra.mxu0 0.0
    %92 = vmatprep.subr.mxu0 0.0
    %93 = vmatpush1.msra.mxu0 0.0
    %94 = vmatprep.subr.mxu0 0.0
    %95 = vmatpush1.msra.mxu0 0.0
    %96 = vmatprep.subr.mxu0 0.0
    %97 = vmatpush1.msra.mxu0 0.0
    %98 = vmatprep.subr.mxu0 0.0
    %99 = vmatpush1.msra.mxu0 0.0
    %100 = vmatprep.subr.mxu0 0.0
    %101 = vmatpush1.msra.mxu0 0.0
    %102 = vmatprep.subr.mxu0 0.0
    %103 = vmatpush1.msra.mxu0 0.0
    %104 = vmatprep.subr.mxu0 0.0
    %105 = vmatpush1.msra.mxu0 0.0
    %106 = vmatprep.subr.mxu0 0.0
    %107 = vmatpush1.msra.mxu0 0.0
    %108 = vmatprep.subr.mxu0 0.0
    %109 = vmatpush1.msra.mxu0 0.0
    %110 = vmatprep.subr.mxu0 0.0
    %111 = vmatpush1.msra.mxu0 0.0
    %112 = vmatprep.subr.mxu0 0.0
    %113 = vmatpush1.msra.mxu0 0.0
    %114 = vmatprep.subr.mxu0 0.0
    %115 = vmatpush1.msra.mxu0 0.0
    %116 = vmatprep.subr.mxu0 0.0
    %117 = vmatpush1.msra.mxu0 0.0
    %118 = vmatprep.subr.mxu0 0.0
    %119 = vmatpush1.msra.mxu0 0.0
    %120 = vmatprep.subr.mxu0 0.0
    %121 = vmatpush1.msra.mxu0 0.0
    %122 = vmatprep.subr.mxu0 0.0
    %123 = vmatpush1.msra.mxu0 0.0
    %124 = vmatprep.subr.mxu0 0.0
    %125 = vmatpush1.msra.mxu0 0.0
    %126 = vmatprep.mubr.f32.mxu0 0.0
    %127 = vmatmul.mubr.f32.gmra.mrb[0].mxu0 %v60
    %v128 = vpop.f32.mrb[0].mxu0
    %v129 = vadd.f32 0.0, %v128
    %v130 = vpop.f32.mrb[0].mxu0
    %131 = vdwg.mxu0
    %v132 = vadd.f32 %v50, %v129
    %v133 = vtanh.pop %v132
    %v135 = vsel %vm58, %v133, 0
    %137 = vmatprep.subr.mxu0 0.0
    %138 = vmatpush1.msra.mxu0 %v42
    %139 = vmatprep.subr.mxu0 0.0
    %140 = vmatpush1.msra.mxu0 %v43
    %141 = vmatprep.subr.mxu0 0.0
    %142 = vmatpush1.msra.mxu0 %v44
    %143 = vmatprep.subr.mxu0 0.0
    %144 = vmatpush1.msra.mxu0 %v45
    %145 = vmatprep.subr.mxu0 0.0
    %146 = vmatpush1.msra.mxu0 %v46
    %147 = vmatprep.subr.mxu0 0.0
    %148 = vmatpush1.msra.mxu0 %v47
    %149 = vmatprep.subr.mxu0 0.0
    %150 = vmatpush1.msra.mxu0 %v48
    %151 = vmatprep.subr.mxu0 0.0
    %152 = vmatpush1.msra.mxu0 %v49
    %153 = vmatprep.subr.mxu0 0.0
    %154 = vmatpush1.msra.mxu0 0.0
    %155 = vmatprep.subr.mxu0 0.0
    %156 = vmatpush1.msra.mxu0 0.0
    %157 = vmatprep.subr.mxu0 0.0
    %158 = vmatpush1.msra.mxu0 0.0
    %159 = vmatprep.subr.mxu0 0.0
    %160 = vmatpush1.msra.mxu0 0.0
    %161 = vmatprep.subr.mxu0 0.0
    %162 = vmatpush1.msra.mxu0 0.0
    %163 = vmatprep.subr.mxu0 0.0
    %164 = vmatpush1.msra.mxu0 0.0
    %165 = vmatprep.subr.mxu0 0.0
    %166 = vmatpush1.msra.mxu0 0.0
    %167 = vmatprep.subr.mxu0 0.0
    %168 = vmatpush1.msra.mxu0 0.0
    %169 = vmatprep.subr.mxu0 0.0
    %170 = vmatpush1.msra.mxu0 0.0
    %171 = vmatprep.subr.mxu0 0.0
    %172 = vmatpush1.msra.mxu0 0.0
    %173 = vmatprep.subr.mxu0 0.0
    %174 = vmatpush1.msra.mxu0 0.0
    %175 = vmatprep.subr.mxu0 0.0
    %176 = vmatpush1.msra.mxu0 0.0
    %177 = vmatprep.subr.mxu0 0.0
    %178 = vmatpush1.msra.mxu0 0.0
    %179 = vmatprep.subr.mxu0 0.0
    %180 = vmatpush1.msra.mxu0 0.0
    %181 = vmatprep.subr.mxu0 0.0
    %182 = vmatpush1.msra.mxu0 0.0
    %183 = vmatprep.subr.mxu0 0.0
    %184 = vmatpush1.msra.mxu0 0.0
    %185 = vmatprep.subr.mxu0 0.0
    %186 = vmatpush1.msra.mxu0 0.0
    %187 = vmatprep.subr.mxu0 0.0
    %188 = vmatpush1.msra.mxu0 0.0
    %189 = vmatprep.subr.mxu0 0.0
    %190 = vmatpush1.msra.mxu0 0.0
    %191 = vmatprep.subr.mxu0 0.0
    %192 = vmatpush1.msra.mxu0 0.0
    %193 = vmatprep.subr.mxu0 0.0
    %194 = vmatpush1.msra.mxu0 0.0
    %195 = vmatprep.subr.mxu0 0.0
    %196 = vmatpush1.msra.mxu0 0.0
    %197 = vmatprep.subr.mxu0 0.0
    %198 = vmatpush1.msra.mxu0 0.0
    %199 = vmatprep.subr.mxu0 0.0
    %200 = vmatpush1.msra.mxu0 0.0
    %201 = vmatprep.mubr.f32.mxu0 0.0
    %202 = vmatmul.mubr.f32.gmra.mrb[0].mxu0 %v135
    %v203 = vpop.f32.mrb[0].mxu0
    %v204 = vadd.f32 0.0, %v203
    %v205 = vpop.f32.mrb[0].mxu0
    %206 = vdwg.mxu0
    %v207 = vadd.f32 %v51, %v204
    %v208 = vtanh.pop %v207
    %v210 = vsel %vm58, %v208, 0
    %212 = vmatprep.subr.mxu0 0.0
    %213 = vmatpush1.msra.mxu0 %v42
    %214 = vmatprep.subr.mxu0 0.0
    %215 = vmatpush1.msra.mxu0 %v43
    %216 = vmatprep.subr.mxu0 0.0
    %217 = vmatpush1.msra.mxu0 %v44
    %218 = vmatprep.subr.mxu0 0.0
    %219 = vmatpush1.msra.mxu0 %v45
    %220 = vmatprep.subr.mxu0 0.0
    %221 = vmatpush1.msra.mxu0 %v46
    %222 = vmatprep.subr.mxu0 0.0
    %223 = vmatpush1.msra.mxu0 %v47
    %224 = vmatprep.subr.mxu0 0.0
    %225 = vmatpush1.msra.mxu0 %v48
    %226 = vmatprep.subr.mxu0 0.0
    %227 = vmatpush1.msra.mxu0 %v49
    %228 = vmatprep.subr.mxu0 0.0
    %229 = vmatpush1.msra.mxu0 0.0
    %230 = vmatprep.subr.mxu0 0.0
    %231 = vmatpush1.msra.mxu0 0.0
    %232 = vmatprep.subr.mxu0 0.0
    %233 = vmatpush1.msra.mxu0 0.0
    %234 = vmatprep.subr.mxu0 0.0
    %235 = vmatpush1.msra.mxu0 0.0
    %236 = vmatprep.subr.mxu0 0.0
    %237 = vmatpush1.msra.mxu0 0.0
    %238 = vmatprep.subr.mxu0 0.0
    %239 = vmatpush1.msra.mxu0 0.0
    %240 = vmatprep.subr.mxu0 0.0
    %241 = vmatpush1.msra.mxu0 0.0
    %242 = vmatprep.subr.mxu0 0.0
    %243 = vmatpush1.msra.mxu0 0.0
    %244 = vmatprep.subr.mxu0 0.0
    %245 = vmatpush1.msra.mxu0 0.0
    %246 = vmatprep.subr.mxu0 0.0
    %247 = vmatpush1.msra.mxu0 0.0
    %248 = vmatprep.subr.mxu0 0.0
    %249 = vmatpush1.msra.mxu0 0.0
    %250 = vmatprep.subr.mxu0 0.0
    %251 = vmatpush1.msra.mxu0 0.0
    %252 = vmatprep.subr.mxu0 0.0
    %253 = vmatpush1.msra.mxu0 0.0
    %254 = vmatprep.subr.mxu0 0.0
    %255 = vmatpush1.msra.mxu0 0.0
    %256 = vmatprep.subr.mxu0 0.0
    %257 = vmatpush1.msra.mxu0 0.0
    %258 = vmatprep.subr.mxu0 0.0
    %259 = vmatpush1.msra.mxu0 0.0
    %260 = vmatprep.subr.mxu0 0.0
    %261 = vmatpush1.msra.mxu0 0.0
    %262 = vmatprep.subr.mxu0 0.0
    %263 = vmatpush1.msra.mxu0 0.0
    %264 = vmatprep.subr.mxu0 0.0
    %265 = vmatpush1.msra.mxu0 0.0
    %266 = vmatprep.subr.mxu0 0.0
    %267 = vmatpush1.msra.mxu0 0.0
    %268 = vmatprep.subr.mxu0 0.0
    %269 = vmatpush1.msra.mxu0 0.0
    %270 = vmatprep.subr.mxu0 0.0
    %271 = vmatpush1.msra.mxu0 0.0
    %272 = vmatprep.subr.mxu0 0.0
    %273 = vmatpush1.msra.mxu0 0.0
    %274 = vmatprep.subr.mxu0 0.0
    %275 = vmatpush1.msra.mxu0 0.0
    %276 = vmatprep.mubr.f32.mxu0 0.0
    %277 = vmatmul.mubr.f32.gmra.mrb[0].mxu0 %v210
    %v278 = vpop.f32.mrb[0].mxu0
    %v279 = vadd.f32 0.0, %v278
    %v280 = vpop.f32.mrb[0].mxu0
    %281 = vdwg.mxu0
    %v282 = vadd.f32 %v52, %v279
    %v283 = vtanh.pop %v282
    %v285 = vsel %vm58, %v283, 0
    %287 = vmatprep.subr.mxu0 0.0
    %288 = vmatpush1.msra.mxu0 %v42
    %289 = vmatprep.subr.mxu0 0.0
    %290 = vmatpush1.msra.mxu0 %v43
    %291 = vmatprep.subr.mxu0 0.0
    %292 = vmatpush1.msra.mxu0 %v44
    %293 = vmatprep.subr.mxu0 0.0
    %294 = vmatpush1.msra.mxu0 %v45
    %295 = vmatprep.subr.mxu0 0.0
    %296 = vmatpush1.msra.mxu0 %v46
    %297 = vmatprep.subr.mxu0 0.0
    %298 = vmatpush1.msra.mxu0 %v47
    %299 = vmatprep.subr.mxu0 0.0
    %300 = vmatpush1.msra.mxu0 %v48
    %301 = vmatprep.subr.mxu0 0.0
    %302 = vmatpush1.msra.mxu0 %v49
    %303 = vmatprep.subr.mxu0 0.0
    %304 = vmatpush1.msra.mxu0 0.0
    %305 = vmatprep.subr.mxu0 0.0
    %306 = vmatpush1.msra.mxu0 0.0
    %307 = vmatprep.subr.mxu0 0.0
    %308 = vmatpush1.msra.mxu0 0.0
    %309 = vmatprep.subr.mxu0 0.0
    %310 = vmatpush1.msra.mxu0 0.0
    %311 = vmatprep.subr.mxu0 0.0
    %312 = vmatpush1.msra.mxu0 0.0
    %313 = vmatprep.subr.mxu0 0.0
    %314 = vmatpush1.msra.mxu0 0.0
    %315 = vmatprep.subr.mxu0 0.0
    %316 = vmatpush1.msra.mxu0 0.0
    %317 = vmatprep.subr.mxu0 0.0
    %318 = vmatpush1.msra.mxu0 0.0
    %319 = vmatprep.subr.mxu0 0.0
    %320 = vmatpush1.msra.mxu0 0.0
    %321 = vmatprep.subr.mxu0 0.0
    %322 = vmatpush1.msra.mxu0 0.0
    %323 = vmatprep.subr.mxu0 0.0
    %324 = vmatpush1.msra.mxu0 0.0
    %325 = vmatprep.subr.mxu0 0.0
    %326 = vmatpush1.msra.mxu0 0.0
    %327 = vmatprep.subr.mxu0 0.0
    %328 = vmatpush1.msra.mxu0 0.0
    %329 = vmatprep.subr.mxu0 0.0
    %330 = vmatpush1.msra.mxu0 0.0
    %331 = vmatprep.subr.mxu0 0.0
    %332 = vmatpush1.msra.mxu0 0.0
    %333 = vmatprep.subr.mxu0 0.0
    %334 = vmatpush1.msra.mxu0 0.0
    %335 = vmatprep.subr.mxu0 0.0
    %336 = vmatpush1.msra.mxu0 0.0
    %337 = vmatprep.subr.mxu0 0.0
    %338 = vmatpush1.msra.mxu0 0.0
    %339 = vmatprep.subr.mxu0 0.0
    %340 = vmatpush1.msra.mxu0 0.0
    %341 = vmatprep.subr.mxu0 0.0
    %342 = vmatpush1.msra.mxu0 0.0
    %343 = vmatprep.subr.mxu0 0.0
    %344 = vmatpush1.msra.mxu0 0.0
    %345 = vmatprep.subr.mxu0 0.0
    %346 = vmatpush1.msra.mxu0 0.0
    %347 = vmatprep.subr.mxu0 0.0
    %348 = vmatpush1.msra.mxu0 0.0
    %349 = vmatprep.subr.mxu0 0.0
    %350 = vmatpush1.msra.mxu0 0.0
    %351 = vmatprep.mubr.f32.mxu0 0.0
    %352 = vmatmul.mubr.f32.gmra.mrb[0].mxu0 %v285
    %v353 = vpop.f32.mrb[0].mxu0
    %v354 = vadd.f32 0.0, %v353
    %v355 = vpop.f32.mrb[0].mxu0
    %356 = vdwg.mxu0
    %v357 = vadd.f32 %v53, %v354
    %v358 = vtanh.pop %v357
    %v360 = vsel %vm58, %v358, 0
    %362 = vmatprep.subr.mxu0 0.0
    %363 = vmatpush1.msra.mxu0 %v42
    %364 = vmatprep.subr.mxu0 0.0
    %365 = vmatpush1.msra.mxu0 %v43
    %366 = vmatprep.subr.mxu0 0.0
    %367 = vmatpush1.msra.mxu0 %v44
    %368 = vmatprep.subr.mxu0 0.0
    %369 = vmatpush1.msra.mxu0 %v45
    %370 = vmatprep.subr.mxu0 0.0
    %371 = vmatpush1.msra.mxu0 %v46
    %372 = vmatprep.subr.mxu0 0.0
    %373 = vmatpush1.msra.mxu0 %v47
    %374 = vmatprep.subr.mxu0 0.0
    %375 = vmatpush1.msra.mxu0 %v48
    %376 = vmatprep.subr.mxu0 0.0
    %377 = vmatpush1.msra.mxu0 %v49
    %378 = vmatprep.subr.mxu0 0.0
    %379 = vmatpush1.msra.mxu0 0.0
    %380 = vmatprep.subr.mxu0 0.0
    %381 = vmatpush1.msra.mxu0 0.0
    %382 = vmatprep.subr.mxu0 0.0
    %383 = vmatpush1.msra.mxu0 0.0
    %384 = vmatprep.subr.mxu0 0.0
    %385 = vmatpush1.msra.mxu0 0.0
    %386 = vmatprep.subr.mxu0 0.0
    %387 = vmatpush1.msra.mxu0 0.0
    %388 = vmatprep.subr.mxu0 0.0
    %389 = vmatpush1.msra.mxu0 0.0
    %390 = vmatprep.subr.mxu0 0.0
    %391 = vmatpush1.msra.mxu0 0.0
    %392 = vmatprep.subr.mxu0 0.0
    %393 = vmatpush1.msra.mxu0 0.0
    %394 = vmatprep.subr.mxu0 0.0
    %395 = vmatpush1.msra.mxu0 0.0
    %396 = vmatprep.subr.mxu0 0.0
    %397 = vmatpush1.msra.mxu0 0.0
    %398 = vmatprep.subr.mxu0 0.0
    %399 = vmatpush1.msra.mxu0 0.0
    %400 = vmatprep.subr.mxu0 0.0
    %401 = vmatpush1.msra.mxu0 0.0
    %402 = vmatprep.subr.mxu0 0.0
    %403 = vmatpush1.msra.mxu0 0.0
    %404 = vmatprep.subr.mxu0 0.0
    %405 = vmatpush1.msra.mxu0 0.0
    %406 = vmatprep.subr.mxu0 0.0
    %407 = vmatpush1.msra.mxu0 0.0
    %408 = vmatprep.subr.mxu0 0.0
    %409 = vmatpush1.msra.mxu0 0.0
    %410 = vmatprep.subr.mxu0 0.0
    %411 = vmatpush1.msra.mxu0 0.0
    %412 = vmatprep.subr.mxu0 0.0
    %413 = vmatpush1.msra.mxu0 0.0
    %414 = vmatprep.subr.mxu0 0.0
    %415 = vmatpush1.msra.mxu0 0.0
    %416 = vmatprep.subr.mxu0 0.0
    %417 = vmatpush1.msra.mxu0 0.0
    %418 = vmatprep.subr.mxu0 0.0
    %419 = vmatpush1.msra.mxu0 0.0
    %420 = vmatprep.subr.mxu0 0.0
    %421 = vmatpush1.msra.mxu0 0.0
    %422 = vmatprep.subr.mxu0 0.0
    %423 = vmatpush1.msra.mxu0 0.0
    %424 = vmatprep.subr.mxu0 0.0
    %425 = vmatpush1.msra.mxu0 0.0
    %426 = vmatprep.mubr.f32.mxu0 0.0
    %427 = vmatmul.mubr.f32.gmra.mrb[0].mxu0 %v360
    %v428 = vpop.f32.mrb[0].mxu0
    %v429 = vadd.f32 0.0, %v428
    %v430 = vpop.f32.mrb[0].mxu0
    %431 = vdwg.mxu0
    %v432 = vadd.f32 %v54, %v429
    %v433 = vtanh.pop %v432
    %v435 = vsel %vm58, %v433, 0
    %437 = vmatprep.subr.mxu0 0.0
    %438 = vmatpush1.msra.mxu0 %v42
    %439 = vmatprep.subr.mxu0 0.0
    %440 = vmatpush1.msra.mxu0 %v43
    %441 = vmatprep.subr.mxu0 0.0
    %442 = vmatpush1.msra.mxu0 %v44
    %443 = vmatprep.subr.mxu0 0.0
    %444 = vmatpush1.msra.mxu0 %v45
    %445 = vmatprep.subr.mxu0 0.0
    %446 = vmatpush1.msra.mxu0 %v46
    %447 = vmatprep.subr.mxu0 0.0
    %448 = vmatpush1.msra.mxu0 %v47
    %449 = vmatprep.subr.mxu0 0.0
    %450 = vmatpush1.msra.mxu0 %v48
    %451 = vmatprep.subr.mxu0 0.0
    %452 = vmatpush1.msra.mxu0 %v49
    %453 = vmatprep.subr.mxu0 0.0
    %454 = vmatpush1.msra.mxu0 0.0
    %455 = vmatprep.subr.mxu0 0.0
    %456 = vmatpush1.msra.mxu0 0.0
    %457 = vmatprep.subr.mxu0 0.0
    %458 = vmatpush1.msra.mxu0 0.0
    %459 = vmatprep.subr.mxu0 0.0
    %460 = vmatpush1.msra.mxu0 0.0
    %461 = vmatprep.subr.mxu0 0.0
    %462 = vmatpush1.msra.mxu0 0.0
    %463 = vmatprep.subr.mxu0 0.0
    %464 = vmatpush1.msra.mxu0 0.0
    %465 = vmatprep.subr.mxu0 0.0
    %466 = vmatpush1.msra.mxu0 0.0
    %467 = vmatprep.subr.mxu0 0.0
    %468 = vmatpush1.msra.mxu0 0.0
    %469 = vmatprep.subr.mxu0 0.0
    %470 = vmatpush1.msra.mxu0 0.0
    %471 = vmatprep.subr.mxu0 0.0
    %472 = vmatpush1.msra.mxu0 0.0
    %473 = vmatprep.subr.mxu0 0.0
    %474 = vmatpush1.msra.mxu0 0.0
    %475 = vmatprep.subr.mxu0 0.0
    %476 = vmatpush1.msra.mxu0 0.0
    %477 = vmatprep.subr.mxu0 0.0
    %478 = vmatpush1.msra.mxu0 0.0
    %479 = vmatprep.subr.mxu0 0.0
    %480 = vmatpush1.msra.mxu0 0.0
    %481 = vmatprep.subr.mxu0 0.0
    %482 = vmatpush1.msra.mxu0 0.0
    %483 = vmatprep.subr.mxu0 0.0
    %484 = vmatpush1.msra.mxu0 0.0
    %485 = vmatprep.subr.mxu0 0.0
    %486 = vmatpush1.msra.mxu0 0.0
    %487 = vmatprep.subr.mxu0 0.0
    %488 = vmatpush1.msra.mxu0 0.0
    %489 = vmatprep.subr.mxu0 0.0
    %490 = vmatpush1.msra.mxu0 0.0
    %491 = vmatprep.subr.mxu0 0.0
    %492 = vmatpush1.msra.mxu0 0.0
    %493 = vmatprep.subr.mxu0 0.0
    %494 = vmatpush1.msra.mxu0 0.0
    %495 = vmatprep.subr.mxu0 0.0
    %496 = vmatpush1.msra.mxu0 0.0
    %497 = vmatprep.subr.mxu0 0.0
    %498 = vmatpush1.msra.mxu0 0.0
    %499 = vmatprep.subr.mxu0 0.0
    %500 = vmatpush1.msra.mxu0 0.0
    %501 = vmatprep.mubr.f32.mxu0 0.0
    %502 = vmatmul.mubr.f32.gmra.mrb[0].mxu0 %v435
    %v503 = vpop.f32.mrb[0].mxu0
    %v504 = vadd.f32 0.0, %v503
    %v505 = vpop.f32.mrb[0].mxu0
    %506 = vdwg.mxu0
    %v507 = vadd.f32 %v55, %v504
    %v508 = vtanh.pop %v507
    %v510 = vsel %vm58, %v508, 0
    %512 = vmatprep.subr.mxu0 0.0
    %513 = vmatpush1.msra.mxu0 %v42
    %514 = vmatprep.subr.mxu0 0.0
    %515 = vmatpush1.msra.mxu0 %v43
    %516 = vmatprep.subr.mxu0 0.0
    %517 = vmatpush1.msra.mxu0 %v44
    %518 = vmatprep.subr.mxu0 0.0
    %519 = vmatpush1.msra.mxu0 %v45
    %520 = vmatprep.subr.mxu0 0.0
    %521 = vmatpush1.msra.mxu0 %v46
    %522 = vmatprep.subr.mxu0 0.0
    %523 = vmatpush1.msra.mxu0 %v47
    %524 = vmatprep.subr.mxu0 0.0
    %525 = vmatpush1.msra.mxu0 %v48
    %526 = vmatprep.subr.mxu0 0.0
    %527 = vmatpush1.msra.mxu0 %v49
    %528 = vmatprep.subr.mxu0 0.0
    %529 = vmatpush1.msra.mxu0 0.0
    %530 = vmatprep.subr.mxu0 0.0
    %531 = vmatpush1.msra.mxu0 0.0
    %532 = vmatprep.subr.mxu0 0.0
    %533 = vmatpush1.msra.mxu0 0.0
    %534 = vmatprep.subr.mxu0 0.0
    %535 = vmatpush1.msra.mxu0 0.0
    %536 = vmatprep.subr.mxu0 0.0
    %537 = vmatpush1.msra.mxu0 0.0
    %538 = vmatprep.subr.mxu0 0.0
    %539 = vmatpush1.msra.mxu0 0.0
    %540 = vmatprep.subr.mxu0 0.0
    %541 = vmatpush1.msra.mxu0 0.0
    %542 = vmatprep.subr.mxu0 0.0
    %543 = vmatpush1.msra.mxu0 0.0
    %544 = vmatprep.subr.mxu0 0.0
    %545 = vmatpush1.msra.mxu0 0.0
    %546 = vmatprep.subr.mxu0 0.0
    %547 = vmatpush1.msra.mxu0 0.0
    %548 = vmatprep.subr.mxu0 0.0
    %549 = vmatpush1.msra.mxu0 0.0
    %550 = vmatprep.subr.mxu0 0.0
    %551 = vmatpush1.msra.mxu0 0.0
    %552 = vmatprep.subr.mxu0 0.0
    %553 = vmatpush1.msra.mxu0 0.0
    %554 = vmatprep.subr.mxu0 0.0
    %555 = vmatpush1.msra.mxu0 0.0
    %556 = vmatprep.subr.mxu0 0.0
    %557 = vmatpush1.msra.mxu0 0.0
    %558 = vmatprep.subr.mxu0 0.0
    %559 = vmatpush1.msra.mxu0 0.0
    %560 = vmatprep.subr.mxu0 0.0
    %561 = vmatpush1.msra.mxu0 0.0
    %562 = vmatprep.subr.mxu0 0.0
    %563 = vmatpush1.msra.mxu0 0.0
    %564 = vmatprep.subr.mxu0 0.0
    %565 = vmatpush1.msra.mxu0 0.0
    %566 = vmatprep.subr.mxu0 0.0
    %567 = vmatpush1.msra.mxu0 0.0
    %568 = vmatprep.subr.mxu0 0.0
    %569 = vmatpush1.msra.mxu0 0.0
    %570 = vmatprep.subr.mxu0 0.0
    %571 = vmatpush1.msra.mxu0 0.0
    %572 = vmatprep.subr.mxu0 0.0
    %573 = vmatpush1.msra.mxu0 0.0
    %574 = vmatprep.subr.mxu0 0.0
    %575 = vmatpush1.msra.mxu0 0.0
    %576 = vmatprep.mubr.f32.mxu0 0.0
    %577 = vmatmul.mubr.f32.gmra.mrb[0].mxu0 %v510
    %v578 = vpop.f32.mrb[0].mxu0
    %v579 = vadd.f32 0.0, %v578
    %v580 = vpop.f32.mrb[0].mxu0
    %581 = vdwg.mxu0
    %v582 = vadd.f32 %v56, %v579
    %v583 = vtanh.pop %v582
    %v585 = vsel %vm58, %v583, 0
    %587 = vmatprep.subr.mxu0 0.0
    %588 = vmatpush1.msra.mxu0 %v42
    %589 = vmatprep.subr.mxu0 0.0
    %590 = vmatpush1.msra.mxu0 %v43
    %591 = vmatprep.subr.mxu0 0.0
    %592 = vmatpush1.msra.mxu0 %v44
    %593 = vmatprep.subr.mxu0 0.0
    %594 = vmatpush1.msra.mxu0 %v45
    %595 = vmatprep.subr.mxu0 0.0
    %596 = vmatpush1.msra.mxu0 %v46
    %597 = vmatprep.subr.mxu0 0.0
    %598 = vmatpush1.msra.mxu0 %v47
    %599 = vmatprep.subr.mxu0 0.0
    %600 = vmatpush1.msra.mxu0 %v48
    %601 = vmatprep.subr.mxu0 0.0
    %602 = vmatpush1.msra.mxu0 %v49
    %603 = vmatprep.subr.mxu0 0.0
    %604 = vmatpush1.msra.mxu0 0.0
    %605 = vmatprep.subr.mxu0 0.0
    %606 = vmatpush1.msra.mxu0 0.0
    %607 = vmatprep.subr.mxu0 0.0
    %608 = vmatpush1.msra.mxu0 0.0
    %609 = vmatprep.subr.mxu0 0.0
    %610 = vmatpush1.msra.mxu0 0.0
    %611 = vmatprep.subr.mxu0 0.0
    %612 = vmatpush1.msra.mxu0 0.0
    %613 = vmatprep.subr.mxu0 0.0
    %614 = vmatpush1.msra.mxu0 0.0
    %615 = vmatprep.subr.mxu0 0.0
    %616 = vmatpush1.msra.mxu0 0.0
    %617 = vmatprep.subr.mxu0 0.0
    %618 = vmatpush1.msra.mxu0 0.0
    %619 = vmatprep.subr.mxu0 0.0
    %620 = vmatpush1.msra.mxu0 0.0
    %621 = vmatprep.subr.mxu0 0.0
    %622 = vmatpush1.msra.mxu0 0.0
    %623 = vmatprep.subr.mxu0 0.0
    %624 = vmatpush1.msra.mxu0 0.0
    %625 = vmatprep.subr.mxu0 0.0
    %626 = vmatpush1.msra.mxu0 0.0
    %627 = vmatprep.subr.mxu0 0.0
    %628 = vmatpush1.msra.mxu0 0.0
    %629 = vmatprep.subr.mxu0 0.0
    %630 = vmatpush1.msra.mxu0 0.0
    %631 = vmatprep.subr.mxu0 0.0
    %632 = vmatpush1.msra.mxu0 0.0
    %633 = vmatprep.subr.mxu0 0.0
    %634 = vmatpush1.msra.mxu0 0.0
    %635 = vmatprep.subr.mxu0 0.0
    %636 = vmatpush1.msra.mxu0 0.0
    %637 = vmatprep.subr.mxu0 0.0
    %638 = vmatpush1.msra.mxu0 0.0
    %639 = vmatprep.subr.mxu0 0.0
    %640 = vmatpush1.msra.mxu0 0.0
    %641 = vmatprep.subr.mxu0 0.0
    %642 = vmatpush1.msra.mxu0 0.0
    %643 = vmatprep.subr.mxu0 0.0
    %644 = vmatpush1.msra.mxu0 0.0
    %645 = vmatprep.subr.mxu0 0.0
    %646 = vmatpush1.msra.mxu0 0.0
    %647 = vmatprep.subr.mxu0 0.0
    %648 = vmatpush1.msra.mxu0 0.0
    %649 = vmatprep.subr.mxu0 0.0
    %650 = vmatpush1.msra.mxu0 0.0
    %651 = vmatprep.mubr.f32.mxu0 0.0
    %652 = vmatmul.mubr.f32.gmra.mrb[0].mxu0 %v585
    %v653 = vpop.f32.mrb[0].mxu0
    %v654 = vadd.f32 0.0, %v653
    %v655 = vpop.f32.mrb[0].mxu0
    %656 = vdwg.mxu0
    %v657 = vadd.f32 %v57, %v654
    %v658 = vtanh.pop %v657
    %v659 = vsel %vm25, %v133, %v658
    %v660 = vsel %vm25, %v208, %v583
    %v661 = vsel %vm25, %v283, %v508
    %v662 = vsel %vm25, %v358, %v433
    %v663 = vsel %vm25, %v433, %v358
    %v664 = vsel %vm25, %v508, %v283
    %v665 = vsel %vm25, %v583, %v208
    %v666 = vsel %vm25, %v658, %v133
    %vm667 = vcmask 517120
    %668 = vst.msk [vmem:[%s6] sm:$0x3] %vm667, %v658
    %v669 = vld [vmem:[%s3] sm:$0xff]
    %v670 = vld [vmem:[%s3 + $0x8] sm:$0xff]
    %v671 = vld [vmem:[%s3 + $0x10] sm:$0xff]
    %v672 = vld [vmem:[%s3 + $0x18] sm:$0xff]
    %v673 = vld [vmem:[%s3 + $0x20] sm:$0xff]
    %v674 = vld [vmem:[%s3 + $0x28] sm:$0xff]
    %v675 = vld [vmem:[%s3 + $0x30] sm:$0xff]
    %v676 = vld [vmem:[%s3 + $0x38] sm:$0xff]
    %v677 = vld [vmem:[%s4] sm:$0x1]
    %v679 = vlaneseq
    %v680 = vshrl.u32 %v679, 7
    %v681 = vsub.s32 0, %v680
    %v682 = vrot.slane %v677, %v681
    %v685 = vsel %vm58, %v659, 0
    %687 = vmatprep.subr.mxu0 0.0
    %688 = vmatpush1.msra.mxu0 %v669
    %689 = vmatprep.subr.mxu0 0.0
    %690 = vmatpush1.msra.mxu0 %v670
    %691 = vmatprep.subr.mxu0 0.0
    %692 = vmatpush1.msra.mxu0 %v671
    %693 = vmatprep.subr.mxu0 0.0
    %694 = vmatpush1.msra.mxu0 %v672
    %695 = vmatprep.subr.mxu0 0.0
    %696 = vmatpush1.msra.mxu0 %v673
    %697 = vmatprep.subr.mxu0 0.0
    %698 = vmatpush1.msra.mxu0 %v674
    %699 = vmatprep.subr.mxu0 0.0
    %700 = vmatpush1.msra.mxu0 %v675
    %701 = vmatprep.subr.mxu0 0.0
    %702 = vmatpush1.msra.mxu0 %v676
    %703 = vmatprep.subr.mxu0 0.0
    %704 = vmatpush1.msra.mxu0 0.0
    %705 = vmatprep.subr.mxu0 0.0
    %706 = vmatpush1.msra.mxu0 0.0
    %707 = vmatprep.subr.mxu0 0.0
    %708 = vmatpush1.msra.mxu0 0.0
    %709 = vmatprep.subr.mxu0 0.0
    %710 = vmatpush1.msra.mxu0 0.0
    %711 = vmatprep.subr.mxu0 0.0
    %712 = vmatpush1.msra.mxu0 0.0
    %713 = vmatprep.subr.mxu0 0.0
    %714 = vmatpush1.msra.mxu0 0.0
    %715 = vmatprep.subr.mxu0 0.0
    %716 = vmatpush1.msra.mxu0 0.0
    %717 = vmatprep.subr.mxu0 0.0
    %718 = vmatpush1.msra.mxu0 0.0
    %719 = vmatprep.subr.mxu0 0.0
    %720 = vmatpush1.msra.mxu0 0.0
    %721 = vmatprep.subr.mxu0 0.0
    %722 = vmatpush1.msra.mxu0 0.0
    %723 = vmatprep.subr.mxu0 0.0
    %724 = vmatpush1.msra.mxu0 0.0
    %725 = vmatprep.subr.mxu0 0.0
    %726 = vmatpush1.msra.mxu0 0.0
    %727 = vmatprep.subr.mxu0 0.0
    %728 = vmatpush1.msra.mxu0 0.0
    %729 = vmatprep.subr.mxu0 0.0
    %730 = vmatpush1.msra.mxu0 0.0
    %731 = vmatprep.subr.mxu0 0.0
    %732 = vmatpush1.msra.mxu0 0.0
    %733 = vmatprep.subr.mxu0 0.0
    %734 = vmatpush1.msra.mxu0 0.0
    %735 = vmatprep.subr.mxu0 0.0
    %736 = vmatpush1.msra.mxu0 0.0
    %737 = vmatprep.subr.mxu0 0.0
    %738 = vmatpush1.msra.mxu0 0.0
    %739 = vmatprep.subr.mxu0 0.0
    %740 = vmatpush1.msra.mxu0 0.0
    %741 = vmatprep.subr.mxu0 0.0
    %742 = vmatpush1.msra.mxu0 0.0
    %743 = vmatprep.subr.mxu0 0.0
    %744 = vmatpush1.msra.mxu0 0.0
    %745 = vmatprep.subr.mxu0 0.0
    %746 = vmatpush1.msra.mxu0 0.0
    %747 = vmatprep.subr.mxu0 0.0
    %748 = vmatpush1.msra.mxu0 0.0
    %749 = vmatprep.subr.mxu0 0.0
    %750 = vmatpush1.msra.mxu0 0.0
    %751 = vmatprep.mubr.f32.mxu0 0.0
    %752 = vmatmul.mubr.f32.gmra.mrb[0].mxu0 %v685
    %v753 = vpop.f32.mrb[0].mxu0
    %v754 = vadd.f32 %v682, %v753
    %v755 = vpop.f32.mrb[0].mxu0
    %756 = vdwg.mxu0
    %v758 = vsel %vm58, %v660, 0
    %760 = vmatprep.subr.mxu0 0.0
    %761 = vmatpush1.msra.mxu0 %v669
    %762 = vmatprep.subr.mxu0 0.0
    %763 = vmatpush1.msra.mxu0 %v670
    %764 = vmatprep.subr.mxu0 0.0
    %765 = vmatpush1.msra.mxu0 %v671
    %766 = vmatprep.subr.mxu0 0.0
    %767 = vmatpush1.msra.mxu0 %v672
    %768 = vmatprep.subr.mxu0 0.0
    %769 = vmatpush1.msra.mxu0 %v673
    %770 = vmatprep.subr.mxu0 0.0
    %771 = vmatpush1.msra.mxu0 %v674
    %772 = vmatprep.subr.mxu0 0.0
    %773 = vmatpush1.msra.mxu0 %v675
    %774 = vmatprep.subr.mxu0 0.0
    %775 = vmatpush1.msra.mxu0 %v676
    %776 = vmatprep.subr.mxu0 0.0
    %777 = vmatpush1.msra.mxu0 0.0
    %778 = vmatprep.subr.mxu0 0.0
    %779 = vmatpush1.msra.mxu0 0.0
    %780 = vmatprep.subr.mxu0 0.0
    %781 = vmatpush1.msra.mxu0 0.0
    %782 = vmatprep.subr.mxu0 0.0
    %783 = vmatpush1.msra.mxu0 0.0
    %784 = vmatprep.subr.mxu0 0.0
    %785 = vmatpush1.msra.mxu0 0.0
    %786 = vmatprep.subr.mxu0 0.0
    %787 = vmatpush1.msra.mxu0 0.0
    %788 = vmatprep.subr.mxu0 0.0
    %789 = vmatpush1.msra.mxu0 0.0
    %790 = vmatprep.subr.mxu0 0.0
    %791 = vmatpush1.msra.mxu0 0.0
    %792 = vmatprep.subr.mxu0 0.0
    %793 = vmatpush1.msra.mxu0 0.0
    %794 = vmatprep.subr.mxu0 0.0
    %795 = vmatpush1.msra.mxu0 0.0
    %796 = vmatprep.subr.mxu0 0.0
    %797 = vmatpush1.msra.mxu0 0.0
    %798 = vmatprep.subr.mxu0 0.0
    %799 = vmatpush1.msra.mxu0 0.0
    %800 = vmatprep.subr.mxu0 0.0
    %801 = vmatpush1.msra.mxu0 0.0
    %802 = vmatprep.subr.mxu0 0.0
    %803 = vmatpush1.msra.mxu0 0.0
    %804 = vmatprep.subr.mxu0 0.0
    %805 = vmatpush1.msra.mxu0 0.0
    %806 = vmatprep.subr.mxu0 0.0
    %807 = vmatpush1.msra.mxu0 0.0
    %808 = vmatprep.subr.mxu0 0.0
    %809 = vmatpush1.msra.mxu0 0.0
    %810 = vmatprep.subr.mxu0 0.0
    %811 = vmatpush1.msra.mxu0 0.0
    %812 = vmatprep.subr.mxu0 0.0
    %813 = vmatpush1.msra.mxu0 0.0
    %814 = vmatprep.subr.mxu0 0.0
    %815 = vmatpush1.msra.mxu0 0.0
    %816 = vmatprep.subr.mxu0 0.0
    %817 = vmatpush1.msra.mxu0 0.0
    %818 = vmatprep.subr.mxu0 0.0
    %819 = vmatpush1.msra.mxu0 0.0
    %820 = vmatprep.subr.mxu0 0.0
    %821 = vmatpush1.msra.mxu0 0.0
    %822 = vmatprep.subr.mxu0 0.0
    %823 = vmatpush1.msra.mxu0 0.0
    %824 = vmatprep.mubr.f32.mxu0 0.0
    %825 = vmatmul.mubr.f32.gmra.mrb[0].mxu0 %v758
    %v826 = vpop.f32.mrb[0].mxu0
    %v827 = vadd.f32 %v682, %v826
    %v828 = vpop.f32.mrb[0].mxu0
    %829 = vdwg.mxu0
    %v831 = vsel %vm58, %v661, 0
    %833 = vmatprep.subr.mxu0 0.0
    %834 = vmatpush1.msra.mxu0 %v669
    %835 = vmatprep.subr.mxu0 0.0
    %836 = vmatpush1.msra.mxu0 %v670
    %837 = vmatprep.subr.mxu0 0.0
    %838 = vmatpush1.msra.mxu0 %v671
    %839 = vmatprep.subr.mxu0 0.0
    %840 = vmatpush1.msra.mxu0 %v672
    %841 = vmatprep.subr.mxu0 0.0
    %842 = vmatpush1.msra.mxu0 %v673
    %843 = vmatprep.subr.mxu0 0.0
    %844 = vmatpush1.msra.mxu0 %v674
    %845 = vmatprep.subr.mxu0 0.0
    %846 = vmatpush1.msra.mxu0 %v675
    %847 = vmatprep.subr.mxu0 0.0
    %848 = vmatpush1.msra.mxu0 %v676
    %849 = vmatprep.subr.mxu0 0.0
    %850 = vmatpush1.msra.mxu0 0.0
    %851 = vmatprep.subr.mxu0 0.0
    %852 = vmatpush1.msra.mxu0 0.0
    %853 = vmatprep.subr.mxu0 0.0
    %854 = vmatpush1.msra.mxu0 0.0
    %855 = vmatprep.subr.mxu0 0.0
    %856 = vmatpush1.msra.mxu0 0.0
    %857 = vmatprep.subr.mxu0 0.0
    %858 = vmatpush1.msra.mxu0 0.0
    %859 = vmatprep.subr.mxu0 0.0
    %860 = vmatpush1.msra.mxu0 0.0
    %861 = vmatprep.subr.mxu0 0.0
    %862 = vmatpush1.msra.mxu0 0.0
    %863 = vmatprep.subr.mxu0 0.0
    %864 = vmatpush1.msra.mxu0 0.0
    %865 = vmatprep.subr.mxu0 0.0
    %866 = vmatpush1.msra.mxu0 0.0
    %867 = vmatprep.subr.mxu0 0.0
    %868 = vmatpush1.msra.mxu0 0.0
    %869 = vmatprep.subr.mxu0 0.0
    %870 = vmatpush1.msra.mxu0 0.0
    %871 = vmatprep.subr.mxu0 0.0
    %872 = vmatpush1.msra.mxu0 0.0
    %873 = vmatprep.subr.mxu0 0.0
    %874 = vmatpush1.msra.mxu0 0.0
    %875 = vmatprep.subr.mxu0 0.0
    %876 = vmatpush1.msra.mxu0 0.0
    %877 = vmatprep.subr.mxu0 0.0
    %878 = vmatpush1.msra.mxu0 0.0
    %879 = vmatprep.subr.mxu0 0.0
    %880 = vmatpush1.msra.mxu0 0.0
    %881 = vmatprep.subr.mxu0 0.0
    %882 = vmatpush1.msra.mxu0 0.0
    %883 = vmatprep.subr.mxu0 0.0
    %884 = vmatpush1.msra.mxu0 0.0
    %885 = vmatprep.subr.mxu0 0.0
    %886 = vmatpush1.msra.mxu0 0.0
    %887 = vmatprep.subr.mxu0 0.0
    %888 = vmatpush1.msra.mxu0 0.0
    %889 = vmatprep.subr.mxu0 0.0
    %890 = vmatpush1.msra.mxu0 0.0
    %891 = vmatprep.subr.mxu0 0.0
    %892 = vmatpush1.msra.mxu0 0.0
    %893 = vmatprep.subr.mxu0 0.0
    %894 = vmatpush1.msra.mxu0 0.0
    %895 = vmatprep.subr.mxu0 0.0
    %896 = vmatpush1.msra.mxu0 0.0
    %897 = vmatprep.mubr.f32.mxu0 0.0
    %898 = vmatmul.mubr.f32.gmra.mrb[0].mxu0 %v831
    %v899 = vpop.f32.mrb[0].mxu0
    %v900 = vadd.f32 %v682, %v899
    %v901 = vpop.f32.mrb[0].mxu0
    %902 = vdwg.mxu0
    %v904 = vsel %vm58, %v662, 0
    %906 = vmatprep.subr.mxu0 0.0
    %907 = vmatpush1.msra.mxu0 %v669
    %908 = vmatprep.subr.mxu0 0.0
    %909 = vmatpush1.msra.mxu0 %v670
    %910 = vmatprep.subr.mxu0 0.0
    %911 = vmatpush1.msra.mxu0 %v671
    %912 = vmatprep.subr.mxu0 0.0
    %913 = vmatpush1.msra.mxu0 %v672
    %914 = vmatprep.subr.mxu0 0.0
    %915 = vmatpush1.msra.mxu0 %v673
    %916 = vmatprep.subr.mxu0 0.0
    %917 = vmatpush1.msra.mxu0 %v674
    %918 = vmatprep.subr.mxu0 0.0
    %919 = vmatpush1.msra.mxu0 %v675
    %920 = vmatprep.subr.mxu0 0.0
    %921 = vmatpush1.msra.mxu0 %v676
    %922 = vmatprep.subr.mxu0 0.0
    %923 = vmatpush1.msra.mxu0 0.0
    %924 = vmatprep.subr.mxu0 0.0
    %925 = vmatpush1.msra.mxu0 0.0
    %926 = vmatprep.subr.mxu0 0.0
    %927 = vmatpush1.msra.mxu0 0.0
    %928 = vmatprep.subr.mxu0 0.0
    %929 = vmatpush1.msra.mxu0 0.0
    %930 = vmatprep.subr.mxu0 0.0
    %931 = vmatpush1.msra.mxu0 0.0
    %932 = vmatprep.subr.mxu0 0.0
    %933 = vmatpush1.msra.mxu0 0.0
    %934 = vmatprep.subr.mxu0 0.0
    %935 = vmatpush1.msra.mxu0 0.0
    %936 = vmatprep.subr.mxu0 0.0
    %937 = vmatpush1.msra.mxu0 0.0
    %938 = vmatprep.subr.mxu0 0.0
    %939 = vmatpush1.msra.mxu0 0.0
    %940 = vmatprep.subr.mxu0 0.0
    %941 = vmatpush1.msra.mxu0 0.0
    %942 = vmatprep.subr.mxu0 0.0
    %943 = vmatpush1.msra.mxu0 0.0
    %944 = vmatprep.subr.mxu0 0.0
    %945 = vmatpush1.msra.mxu0 0.0
    %946 = vmatprep.subr.mxu0 0.0
    %947 = vmatpush1.msra.mxu0 0.0
    %948 = vmatprep.subr.mxu0 0.0
    %949 = vmatpush1.msra.mxu0 0.0
    %950 = vmatprep.subr.mxu0 0.0
    %951 = vmatpush1.msra.mxu0 0.0
    %952 = vmatprep.subr.mxu0 0.0
    %953 = vmatpush1.msra.mxu0 0.0
    %954 = vmatprep.subr.mxu0 0.0
    %955 = vmatpush1.msra.mxu0 0.0
    %956 = vmatprep.subr.mxu0 0.0
    %957 = vmatpush1.msra.mxu0 0.0
    %958 = vmatprep.subr.mxu0 0.0
    %959 = vmatpush1.msra.mxu0 0.0
    %960 = vmatprep.subr.mxu0 0.0
    %961 = vmatpush1.msra.mxu0 0.0
    %962 = vmatprep.subr.mxu0 0.0
    %963 = vmatpush1.msra.mxu0 0.0
    %964 = vmatprep.subr.mxu0 0.0
    %965 = vmatpush1.msra.mxu0 0.0
    %966 = vmatprep.subr.mxu0 0.0
    %967 = vmatpush1.msra.mxu0 0.0
    %968 = vmatprep.subr.mxu0 0.0
    %969 = vmatpush1.msra.mxu0 0.0
    %970 = vmatprep.mubr.f32.mxu0 0.0
    %971 = vmatmul.mubr.f32.gmra.mrb[0].mxu0 %v904
    %v972 = vpop.f32.mrb[0].mxu0
    %v973 = vadd.f32 %v682, %v972
    %v974 = vpop.f32.mrb[0].mxu0
    %975 = vdwg.mxu0
    %v977 = vsel %vm58, %v663, 0
    %979 = vmatprep.subr.mxu0 0.0
    %980 = vmatpush1.msra.mxu0 %v669
    %981 = vmatprep.subr.mxu0 0.0
    %982 = vmatpush1.msra.mxu0 %v670
    %983 = vmatprep.subr.mxu0 0.0
    %984 = vmatpush1.msra.mxu0 %v671
    %985 = vmatprep.subr.mxu0 0.0
    %986 = vmatpush1.msra.mxu0 %v672
    %987 = vmatprep.subr.mxu0 0.0
    %988 = vmatpush1.msra.mxu0 %v673
    %989 = vmatprep.subr.mxu0 0.0
    %990 = vmatpush1.msra.mxu0 %v674
    %991 = vmatprep.subr.mxu0 0.0
    %992 = vmatpush1.msra.mxu0 %v675
    %993 = vmatprep.subr.mxu0 0.0
    %994 = vmatpush1.msra.mxu0 %v676
    %995 = vmatprep.subr.mxu0 0.0
    %996 = vmatpush1.msra.mxu0 0.0
    %997 = vmatprep.subr.mxu0 0.0
    %998 = vmatpush1.msra.mxu0 0.0
    %999 = vmatprep.subr.mxu0 0.0
    %1000 = vmatpush1.msra.mxu0 0.0
    %1001 = vmatprep.subr.mxu0 0.0
    %1002 = vmatpush1.msra.mxu0 0.0
    %1003 = vmatprep.subr.mxu0 0.0
    %1004 = vmatpush1.msra.mxu0 0.0
    %1005 = vmatprep.subr.mxu0 0.0
    %1006 = vmatpush1.msra.mxu0 0.0
    %1007 = vmatprep.subr.mxu0 0.0
    %1008 = vmatpush1.msra.mxu0 0.0
    %1009 = vmatprep.subr.mxu0 0.0
    %1010 = vmatpush1.msra.mxu0 0.0
    %1011 = vmatprep.subr.mxu0 0.0
    %1012 = vmatpush1.msra.mxu0 0.0
    %1013 = vmatprep.subr.mxu0 0.0
    %1014 = vmatpush1.msra.mxu0 0.0
    %1015 = vmatprep.subr.mxu0 0.0
    %1016 = vmatpush1.msra.mxu0 0.0
    %1017 = vmatprep.subr.mxu0 0.0
    %1018 = vmatpush1.msra.mxu0 0.0
    %1019 = vmatprep.subr.mxu0 0.0
    %1020 = vmatpush1.msra.mxu0 0.0
    %1021 = vmatprep.subr.mxu0 0.0
    %1022 = vmatpush1.msra.mxu0 0.0
    %1023 = vmatprep.subr.mxu0 0.0
    %1024 = vmatpush1.msra.mxu0 0.0
    %1025 = vmatprep.subr.mxu0 0.0
    %1026 = vmatpush1.msra.mxu0 0.0
    %1027 = vmatprep.subr.mxu0 0.0
    %1028 = vmatpush1.msra.mxu0 0.0
    %1029 = vmatprep.subr.mxu0 0.0
    %1030 = vmatpush1.msra.mxu0 0.0
    %1031 = vmatprep.subr.mxu0 0.0
    %1032 = vmatpush1.msra.mxu0 0.0
    %1033 = vmatprep.subr.mxu0 0.0
    %1034 = vmatpush1.msra.mxu0 0.0
    %1035 = vmatprep.subr.mxu0 0.0
    %1036 = vmatpush1.msra.mxu0 0.0
    %1037 = vmatprep.subr.mxu0 0.0
    %1038 = vmatpush1.msra.mxu0 0.0
    %1039 = vmatprep.subr.mxu0 0.0
    %1040 = vmatpush1.msra.mxu0 0.0
    %1041 = vmatprep.subr.mxu0 0.0
    %1042 = vmatpush1.msra.mxu0 0.0
    %1043 = vmatprep.mubr.f32.mxu0 0.0
    %1044 = vmatmul.mubr.f32.gmra.mrb[0].mxu0 %v977
    %v1045 = vpop.f32.mrb[0].mxu0
    %v1046 = vadd.f32 %v682, %v1045
    %v1047 = vpop.f32.mrb[0].mxu0
    %1048 = vdwg.mxu0
    %v1050 = vsel %vm58, %v664, 0
    %1052 = vmatprep.subr.mxu0 0.0
    %1053 = vmatpush1.msra.mxu0 %v669
    %1054 = vmatprep.subr.mxu0 0.0
    %1055 = vmatpush1.msra.mxu0 %v670
    %1056 = vmatprep.subr.mxu0 0.0
    %1057 = vmatpush1.msra.mxu0 %v671
    %1058 = vmatprep.subr.mxu0 0.0
    %1059 = vmatpush1.msra.mxu0 %v672
    %1060 = vmatprep.subr.mxu0 0.0
    %1061 = vmatpush1.msra.mxu0 %v673
    %1062 = vmatprep.subr.mxu0 0.0
    %1063 = vmatpush1.msra.mxu0 %v674
    %1064 = vmatprep.subr.mxu0 0.0
    %1065 = vmatpush1.msra.mxu0 %v675
    %1066 = vmatprep.subr.mxu0 0.0
    %1067 = vmatpush1.msra.mxu0 %v676
    %1068 = vmatprep.subr.mxu0 0.0
    %1069 = vmatpush1.msra.mxu0 0.0
    %1070 = vmatprep.subr.mxu0 0.0
    %1071 = vmatpush1.msra.mxu0 0.0
    %1072 = vmatprep.subr.mxu0 0.0
    %1073 = vmatpush1.msra.mxu0 0.0
    %1074 = vmatprep.subr.mxu0 0.0
    %1075 = vmatpush1.msra.mxu0 0.0
    %1076 = vmatprep.subr.mxu0 0.0
    %1077 = vmatpush1.msra.mxu0 0.0
    %1078 = vmatprep.subr.mxu0 0.0
    %1079 = vmatpush1.msra.mxu0 0.0
    %1080 = vmatprep.subr.mxu0 0.0
    %1081 = vmatpush1.msra.mxu0 0.0
    %1082 = vmatprep.subr.mxu0 0.0
    %1083 = vmatpush1.msra.mxu0 0.0
    %1084 = vmatprep.subr.mxu0 0.0
    %1085 = vmatpush1.msra.mxu0 0.0
    %1086 = vmatprep.subr.mxu0 0.0
    %1087 = vmatpush1.msra.mxu0 0.0
    %1088 = vmatprep.subr.mxu0 0.0
    %1089 = vmatpush1.msra.mxu0 0.0
    %1090 = vmatprep.subr.mxu0 0.0
    %1091 = vmatpush1.msra.mxu0 0.0
    %1092 = vmatprep.subr.mxu0 0.0
    %1093 = vmatpush1.msra.mxu0 0.0
    %1094 = vmatprep.subr.mxu0 0.0
    %1095 = vmatpush1.msra.mxu0 0.0
    %1096 = vmatprep.subr.mxu0 0.0
    %1097 = vmatpush1.msra.mxu0 0.0
    %1098 = vmatprep.subr.mxu0 0.0
    %1099 = vmatpush1.msra.mxu0 0.0
    %1100 = vmatprep.subr.mxu0 0.0
    %1101 = vmatpush1.msra.mxu0 0.0
    %1102 = vmatprep.subr.mxu0 0.0
    %1103 = vmatpush1.msra.mxu0 0.0
    %1104 = vmatprep.subr.mxu0 0.0
    %1105 = vmatpush1.msra.mxu0 0.0
    %1106 = vmatprep.subr.mxu0 0.0
    %1107 = vmatpush1.msra.mxu0 0.0
    %1108 = vmatprep.subr.mxu0 0.0
    %1109 = vmatpush1.msra.mxu0 0.0
    %1110 = vmatprep.subr.mxu0 0.0
    %1111 = vmatpush1.msra.mxu0 0.0
    %1112 = vmatprep.subr.mxu0 0.0
    %1113 = vmatpush1.msra.mxu0 0.0
    %1114 = vmatprep.subr.mxu0 0.0
    %1115 = vmatpush1.msra.mxu0 0.0
    %1116 = vmatprep.mubr.f32.mxu0 0.0
    %1117 = vmatmul.mubr.f32.gmra.mrb[0].mxu0 %v1050
    %v1118 = vpop.f32.mrb[0].mxu0
    %v1119 = vadd.f32 %v682, %v1118
    %v1120 = vpop.f32.mrb[0].mxu0
    %1121 = vdwg.mxu0
    %v1123 = vsel %vm58, %v665, 0
    %1125 = vmatprep.subr.mxu0 0.0
    %1126 = vmatpush1.msra.mxu0 %v669
    %1127 = vmatprep.subr.mxu0 0.0
    %1128 = vmatpush1.msra.mxu0 %v670
    %1129 = vmatprep.subr.mxu0 0.0
    %1130 = vmatpush1.msra.mxu0 %v671
    %1131 = vmatprep.subr.mxu0 0.0
    %1132 = vmatpush1.msra.mxu0 %v672
    %1133 = vmatprep.subr.mxu0 0.0
    %1134 = vmatpush1.msra.mxu0 %v673
    %1135 = vmatprep.subr.mxu0 0.0
    %1136 = vmatpush1.msra.mxu0 %v674
    %1137 = vmatprep.subr.mxu0 0.0
    %1138 = vmatpush1.msra.mxu0 %v675
    %1139 = vmatprep.subr.mxu0 0.0
    %1140 = vmatpush1.msra.mxu0 %v676
    %1141 = vmatprep.subr.mxu0 0.0
    %1142 = vmatpush1.msra.mxu0 0.0
    %1143 = vmatprep.subr.mxu0 0.0
    %1144 = vmatpush1.msra.mxu0 0.0
    %1145 = vmatprep.subr.mxu0 0.0
    %1146 = vmatpush1.msra.mxu0 0.0
    %1147 = vmatprep.subr.mxu0 0.0
    %1148 = vmatpush1.msra.mxu0 0.0
    %1149 = vmatprep.subr.mxu0 0.0
    %1150 = vmatpush1.msra.mxu0 0.0
    %1151 = vmatprep.subr.mxu0 0.0
    %1152 = vmatpush1.msra.mxu0 0.0
    %1153 = vmatprep.subr.mxu0 0.0
    %1154 = vmatpush1.msra.mxu0 0.0
    %1155 = vmatprep.subr.mxu0 0.0
    %1156 = vmatpush1.msra.mxu0 0.0
    %1157 = vmatprep.subr.mxu0 0.0
    %1158 = vmatpush1.msra.mxu0 0.0
    %1159 = vmatprep.subr.mxu0 0.0
    %1160 = vmatpush1.msra.mxu0 0.0
    %1161 = vmatprep.subr.mxu0 0.0
    %1162 = vmatpush1.msra.mxu0 0.0
    %1163 = vmatprep.subr.mxu0 0.0
    %1164 = vmatpush1.msra.mxu0 0.0
    %1165 = vmatprep.subr.mxu0 0.0
    %1166 = vmatpush1.msra.mxu0 0.0
    %1167 = vmatprep.subr.mxu0 0.0
    %1168 = vmatpush1.msra.mxu0 0.0
    %1169 = vmatprep.subr.mxu0 0.0
    %1170 = vmatpush1.msra.mxu0 0.0
    %1171 = vmatprep.subr.mxu0 0.0
    %1172 = vmatpush1.msra.mxu0 0.0
    %1173 = vmatprep.subr.mxu0 0.0
    %1174 = vmatpush1.msra.mxu0 0.0
    %1175 = vmatprep.subr.mxu0 0.0
    %1176 = vmatpush1.msra.mxu0 0.0
    %1177 = vmatprep.subr.mxu0 0.0
    %1178 = vmatpush1.msra.mxu0 0.0
    %1179 = vmatprep.subr.mxu0 0.0
    %1180 = vmatpush1.msra.mxu0 0.0
    %1181 = vmatprep.subr.mxu0 0.0
    %1182 = vmatpush1.msra.mxu0 0.0
    %1183 = vmatprep.subr.mxu0 0.0
    %1184 = vmatpush1.msra.mxu0 0.0
    %1185 = vmatprep.subr.mxu0 0.0
    %1186 = vmatpush1.msra.mxu0 0.0
    %1187 = vmatprep.subr.mxu0 0.0
    %1188 = vmatpush1.msra.mxu0 0.0
    %1189 = vmatprep.mubr.f32.mxu0 0.0
    %1190 = vmatmul.mubr.f32.gmra.mrb[0].mxu0 %v1123
    %v1191 = vpop.f32.mrb[0].mxu0
    %v1192 = vadd.f32 %v682, %v1191
    %v1193 = vpop.f32.mrb[0].mxu0
    %1194 = vdwg.mxu0
    %v1196 = vsel %vm58, %v666, 0
    %1198 = vmatprep.subr.mxu0 0.0
    %1199 = vmatpush1.msra.mxu0 %v669
    %1200 = vmatprep.subr.mxu0 0.0
    %1201 = vmatpush1.msra.mxu0 %v670
    %1202 = vmatprep.subr.mxu0 0.0
    %1203 = vmatpush1.msra.mxu0 %v671
    %1204 = vmatprep.subr.mxu0 0.0
    %1205 = vmatpush1.msra.mxu0 %v672
    %1206 = vmatprep.subr.mxu0 0.0
    %1207 = vmatpush1.msra.mxu0 %v673
    %1208 = vmatprep.subr.mxu0 0.0
    %1209 = vmatpush1.msra.mxu0 %v674
    %1210 = vmatprep.subr.mxu0 0.0
    %1211 = vmatpush1.msra.mxu0 %v675
    %1212 = vmatprep.subr.mxu0 0.0
    %1213 = vmatpush1.msra.mxu0 %v676
    %1214 = vmatprep.subr.mxu0 0.0
    %1215 = vmatpush1.msra.mxu0 0.0
    %1216 = vmatprep.subr.mxu0 0.0
    %1217 = vmatpush1.msra.mxu0 0.0
    %1218 = vmatprep.subr.mxu0 0.0
    %1219 = vmatpush1.msra.mxu0 0.0
    %1220 = vmatprep.subr.mxu0 0.0
    %1221 = vmatpush1.msra.mxu0 0.0
    %1222 = vmatprep.subr.mxu0 0.0
    %1223 = vmatpush1.msra.mxu0 0.0
    %1224 = vmatprep.subr.mxu0 0.0
    %1225 = vmatpush1.msra.mxu0 0.0
    %1226 = vmatprep.subr.mxu0 0.0
    %1227 = vmatpush1.msra.mxu0 0.0
    %1228 = vmatprep.subr.mxu0 0.0
    %1229 = vmatpush1.msra.mxu0 0.0
    %1230 = vmatprep.subr.mxu0 0.0
    %1231 = vmatpush1.msra.mxu0 0.0
    %1232 = vmatprep.subr.mxu0 0.0
    %1233 = vmatpush1.msra.mxu0 0.0
    %1234 = vmatprep.subr.mxu0 0.0
    %1235 = vmatpush1.msra.mxu0 0.0
    %1236 = vmatprep.subr.mxu0 0.0
    %1237 = vmatpush1.msra.mxu0 0.0
    %1238 = vmatprep.subr.mxu0 0.0
    %1239 = vmatpush1.msra.mxu0 0.0
    %1240 = vmatprep.subr.mxu0 0.0
    %1241 = vmatpush1.msra.mxu0 0.0
    %1242 = vmatprep.subr.mxu0 0.0
    %1243 = vmatpush1.msra.mxu0 0.0
    %1244 = vmatprep.subr.mxu0 0.0
    %1245 = vmatpush1.msra.mxu0 0.0
    %1246 = vmatprep.subr.mxu0 0.0
    %1247 = vmatpush1.msra.mxu0 0.0
    %1248 = vmatprep.subr.mxu0 0.0
    %1249 = vmatpush1.msra.mxu0 0.0
    %1250 = vmatprep.subr.mxu0 0.0
    %1251 = vmatpush1.msra.mxu0 0.0
    %1252 = vmatprep.subr.mxu0 0.0
    %1253 = vmatpush1.msra.mxu0 0.0
    %1254 = vmatprep.subr.mxu0 0.0
    %1255 = vmatpush1.msra.mxu0 0.0
    %1256 = vmatprep.subr.mxu0 0.0
    %1257 = vmatpush1.msra.mxu0 0.0
    %1258 = vmatprep.subr.mxu0 0.0
    %1259 = vmatpush1.msra.mxu0 0.0
    %1260 = vmatprep.subr.mxu0 0.0
    %1261 = vmatpush1.msra.mxu0 0.0
    %1262 = vmatprep.mubr.f32.mxu0 0.0
    %1263 = vmatmul.mubr.f32.gmra.mrb[0].mxu0 %v1196
    %v1264 = vpop.f32.mrb[0].mxu0
    %v1265 = vadd.f32 %v682, %v1264
    %v1266 = vpop.f32.mrb[0].mxu0
    %1267 = vdwg.mxu0
    %s1268 = scalar_lea.vmem %s1, 2
    %v1269 = vld [vmem:[%s1268] sm:$0x3]
    %s1270 = scalar_lea.vmem %s2, 64
    %v1271 = vld [vmem:[%s1270] sm:$0xff]
    %v1272 = vld [vmem:[%s1270 + $0x8] sm:$0xff]
    %v1273 = vld [vmem:[%s1270 + $0x10] sm:$0xff]
    %v1274 = vld [vmem:[%s1270 + $0x18] sm:$0xff]
    %v1275 = vld [vmem:[%s1270 + $0x20] sm:$0xff]
    %v1276 = vld [vmem:[%s1270 + $0x28] sm:$0xff]
    %v1277 = vld [vmem:[%s1270 + $0x30] sm:$0xff]
    %v1278 = vld [vmem:[%s1270 + $0x38] sm:$0xff]
    %v1279 = vsel %vm25, %v754, %v1265
    %v1280 = vsel %vm25, %v827, %v1192
    %v1281 = vsel %vm25, %v900, %v1119
    %v1282 = vsel %vm25, %v973, %v1046
    %v1283 = vsel %vm25, %v1046, %v973
    %v1284 = vsel %vm25, %v1119, %v900
    %v1285 = vsel %vm25, %v1192, %v827
    %v1286 = vsel %vm25, %v1265, %v754
    %v1288 = vsel %vm58, %v1269, 0
    %1290 = vmatprep.subr.mxu0 0.0
    %1291 = vmatpush1.msra.mxu0 %v1271
    %1292 = vmatprep.subr.mxu0 0.0
    %1293 = vmatpush1.msra.mxu0 %v1272
    %1294 = vmatprep.subr.mxu0 0.0
    %1295 = vmatpush1.msra.mxu0 %v1273
    %1296 = vmatprep.subr.mxu0 0.0
    %1297 = vmatpush1.msra.mxu0 %v1274
    %1298 = vmatprep.subr.mxu0 0.0
    %1299 = vmatpush1.msra.mxu0 %v1275
    %1300 = vmatprep.subr.mxu0 0.0
    %1301 = vmatpush1.msra.mxu0 %v1276
    %1302 = vmatprep.subr.mxu0 0.0
    %1303 = vmatpush1.msra.mxu0 %v1277
    %1304 = vmatprep.subr.mxu0 0.0
    %1305 = vmatpush1.msra.mxu0 %v1278
    %1306 = vmatprep.subr.mxu0 0.0
    %1307 = vmatpush1.msra.mxu0 0.0
    %1308 = vmatprep.subr.mxu0 0.0
    %1309 = vmatpush1.msra.mxu0 0.0
    %1310 = vmatprep.subr.mxu0 0.0
    %1311 = vmatpush1.msra.mxu0 0.0
    %1312 = vmatprep.subr.mxu0 0.0
    %1313 = vmatpush1.msra.mxu0 0.0
    %1314 = vmatprep.subr.mxu0 0.0
    %1315 = vmatpush1.msra.mxu0 0.0
    %1316 = vmatprep.subr.mxu0 0.0
    %1317 = vmatpush1.msra.mxu0 0.0
    %1318 = vmatprep.subr.mxu0 0.0
    %1319 = vmatpush1.msra.mxu0 0.0
    %1320 = vmatprep.subr.mxu0 0.0
    %1321 = vmatpush1.msra.mxu0 0.0
    %1322 = vmatprep.subr.mxu0 0.0
    %1323 = vmatpush1.msra.mxu0 0.0
    %1324 = vmatprep.subr.mxu0 0.0
    %1325 = vmatpush1.msra.mxu0 0.0
    %1326 = vmatprep.subr.mxu0 0.0
    %1327 = vmatpush1.msra.mxu0 0.0
    %1328 = vmatprep.subr.mxu0 0.0
    %1329 = vmatpush1.msra.mxu0 0.0
    %1330 = vmatprep.subr.mxu0 0.0
    %1331 = vmatpush1.msra.mxu0 0.0
    %1332 = vmatprep.subr.mxu0 0.0
    %1333 = vmatpush1.msra.mxu0 0.0
    %1334 = vmatprep.subr.mxu0 0.0
    %1335 = vmatpush1.msra.mxu0 0.0
    %1336 = vmatprep.subr.mxu0 0.0
    %1337 = vmatpush1.msra.mxu0 0.0
    %1338 = vmatprep.subr.mxu0 0.0
    %1339 = vmatpush1.msra.mxu0 0.0
    %1340 = vmatprep.subr.mxu0 0.0
    %1341 = vmatpush1.msra.mxu0 0.0
    %1342 = vmatprep.subr.mxu0 0.0
    %1343 = vmatpush1.msra.mxu0 0.0
    %1344 = vmatprep.subr.mxu0 0.0
    %1345 = vmatpush1.msra.mxu0 0.0
    %1346 = vmatprep.subr.mxu0 0.0
    %1347 = vmatpush1.msra.mxu0 0.0
    %1348 = vmatprep.subr.mxu0 0.0
    %1349 = vmatpush1.msra.mxu0 0.0
    %1350 = vmatprep.subr.mxu0 0.0
    %1351 = vmatpush1.msra.mxu0 0.0
    %1352 = vmatprep.subr.mxu0 0.0
    %1353 = vmatpush1.msra.mxu0 0.0
    %1354 = vmatprep.mubr.f32.mxu0 0.0
    %1355 = vmatmul.mubr.f32.gmra.mrb[0].mxu0 %v1288
    %v1356 = vpop.f32.mrb[0].mxu0
    %v1357 = vadd.f32 0.0, %v1356
    %v1358 = vpop.f32.mrb[0].mxu0
    %1359 = vdwg.mxu0
    %v1360 = vadd.f32 %v1279, %v1357
    %v1361 = vtanh.pop %v1360
    %v1363 = vsel %vm58, %v1361, 0
    %1365 = vmatprep.subr.mxu0 0.0
    %1366 = vmatpush1.msra.mxu0 %v1271
    %1367 = vmatprep.subr.mxu0 0.0
    %1368 = vmatpush1.msra.mxu0 %v1272
    %1369 = vmatprep.subr.mxu0 0.0
    %1370 = vmatpush1.msra.mxu0 %v1273
    %1371 = vmatprep.subr.mxu0 0.0
    %1372 = vmatpush1.msra.mxu0 %v1274
    %1373 = vmatprep.subr.mxu0 0.0
    %1374 = vmatpush1.msra.mxu0 %v1275
    %1375 = vmatprep.subr.mxu0 0.0
    %1376 = vmatpush1.msra.mxu0 %v1276
    %1377 = vmatprep.subr.mxu0 0.0
    %1378 = vmatpush1.msra.mxu0 %v1277
    %1379 = vmatprep.subr.mxu0 0.0
    %1380 = vmatpush1.msra.mxu0 %v1278
    %1381 = vmatprep.subr.mxu0 0.0
    %1382 = vmatpush1.msra.mxu0 0.0
    %1383 = vmatprep.subr.mxu0 0.0
    %1384 = vmatpush1.msra.mxu0 0.0
    %1385 = vmatprep.subr.mxu0 0.0
    %1386 = vmatpush1.msra.mxu0 0.0
    %1387 = vmatprep.subr.mxu0 0.0
    %1388 = vmatpush1.msra.mxu0 0.0
    %1389 = vmatprep.subr.mxu0 0.0
    %1390 = vmatpush1.msra.mxu0 0.0
    %1391 = vmatprep.subr.mxu0 0.0
    %1392 = vmatpush1.msra.mxu0 0.0
    %1393 = vmatprep.subr.mxu0 0.0
    %1394 = vmatpush1.msra.mxu0 0.0
    %1395 = vmatprep.subr.mxu0 0.0
    %1396 = vmatpush1.msra.mxu0 0.0
    %1397 = vmatprep.subr.mxu0 0.0
    %1398 = vmatpush1.msra.mxu0 0.0
    %1399 = vmatprep.subr.mxu0 0.0
    %1400 = vmatpush1.msra.mxu0 0.0
    %1401 = vmatprep.subr.mxu0 0.0
    %1402 = vmatpush1.msra.mxu0 0.0
    %1403 = vmatprep.subr.mxu0 0.0
    %1404 = vmatpush1.msra.mxu0 0.0
    %1405 = vmatprep.subr.mxu0 0.0
    %1406 = vmatpush1.msra.mxu0 0.0
    %1407 = vmatprep.subr.mxu0 0.0
    %1408 = vmatpush1.msra.mxu0 0.0
    %1409 = vmatprep.subr.mxu0 0.0
    %1410 = vmatpush1.msra.mxu0 0.0
    %1411 = vmatprep.subr.mxu0 0.0
    %1412 = vmatpush1.msra.mxu0 0.0
    %1413 = vmatprep.subr.mxu0 0.0
    %1414 = vmatpush1.msra.mxu0 0.0
    %1415 = vmatprep.subr.mxu0 0.0
    %1416 = vmatpush1.msra.mxu0 0.0
    %1417 = vmatprep.subr.mxu0 0.0
    %1418 = vmatpush1.msra.mxu0 0.0
    %1419 = vmatprep.subr.mxu0 0.0
    %1420 = vmatpush1.msra.mxu0 0.0
    %1421 = vmatprep.subr.mxu0 0.0
    %1422 = vmatpush1.msra.mxu0 0.0
    %1423 = vmatprep.subr.mxu0 0.0
    %1424 = vmatpush1.msra.mxu0 0.0
    %1425 = vmatprep.subr.mxu0 0.0
    %1426 = vmatpush1.msra.mxu0 0.0
    %1427 = vmatprep.subr.mxu0 0.0
    %1428 = vmatpush1.msra.mxu0 0.0
    %1429 = vmatprep.mubr.f32.mxu0 0.0
    %1430 = vmatmul.mubr.f32.gmra.mrb[0].mxu0 %v1363
    %v1431 = vpop.f32.mrb[0].mxu0
    %v1432 = vadd.f32 0.0, %v1431
    %v1433 = vpop.f32.mrb[0].mxu0
    %1434 = vdwg.mxu0
    %v1435 = vadd.f32 %v1280, %v1432
    %v1436 = vtanh.pop %v1435
    %v1438 = vsel %vm58, %v1436, 0
    %1440 = vmatprep.subr.mxu0 0.0
    %1441 = vmatpush1.msra.mxu0 %v1271
    %1442 = vmatprep.subr.mxu0 0.0
    %1443 = vmatpush1.msra.mxu0 %v1272
    %1444 = vmatprep.subr.mxu0 0.0
    %1445 = vmatpush1.msra.mxu0 %v1273
    %1446 = vmatprep.subr.mxu0 0.0
    %1447 = vmatpush1.msra.mxu0 %v1274
    %1448 = vmatprep.subr.mxu0 0.0
    %1449 = vmatpush1.msra.mxu0 %v1275
    %1450 = vmatprep.subr.mxu0 0.0
    %1451 = vmatpush1.msra.mxu0 %v1276
    %1452 = vmatprep.subr.mxu0 0.0
    %1453 = vmatpush1.msra.mxu0 %v1277
    %1454 = vmatprep.subr.mxu0 0.0
    %1455 = vmatpush1.msra.mxu0 %v1278
    %1456 = vmatprep.subr.mxu0 0.0
    %1457 = vmatpush1.msra.mxu0 0.0
    %1458 = vmatprep.subr.mxu0 0.0
    %1459 = vmatpush1.msra.mxu0 0.0
    %1460 = vmatprep.subr.mxu0 0.0
    %1461 = vmatpush1.msra.mxu0 0.0
    %1462 = vmatprep.subr.mxu0 0.0
    %1463 = vmatpush1.msra.mxu0 0.0
    %1464 = vmatprep.subr.mxu0 0.0
    %1465 = vmatpush1.msra.mxu0 0.0
    %1466 = vmatprep.subr.mxu0 0.0
    %1467 = vmatpush1.msra.mxu0 0.0
    %1468 = vmatprep.subr.mxu0 0.0
    %1469 = vmatpush1.msra.mxu0 0.0
    %1470 = vmatprep.subr.mxu0 0.0
    %1471 = vmatpush1.msra.mxu0 0.0
    %1472 = vmatprep.subr.mxu0 0.0
    %1473 = vmatpush1.msra.mxu0 0.0
    %1474 = vmatprep.subr.mxu0 0.0
    %1475 = vmatpush1.msra.mxu0 0.0
    %1476 = vmatprep.subr.mxu0 0.0
    %1477 = vmatpush1.msra.mxu0 0.0
    %1478 = vmatprep.subr.mxu0 0.0
    %1479 = vmatpush1.msra.mxu0 0.0
    %1480 = vmatprep.subr.mxu0 0.0
    %1481 = vmatpush1.msra.mxu0 0.0
    %1482 = vmatprep.subr.mxu0 0.0
    %1483 = vmatpush1.msra.mxu0 0.0
    %1484 = vmatprep.subr.mxu0 0.0
    %1485 = vmatpush1.msra.mxu0 0.0
    %1486 = vmatprep.subr.mxu0 0.0
    %1487 = vmatpush1.msra.mxu0 0.0
    %1488 = vmatprep.subr.mxu0 0.0
    %1489 = vmatpush1.msra.mxu0 0.0
    %1490 = vmatprep.subr.mxu0 0.0
    %1491 = vmatpush1.msra.mxu0 0.0
    %1492 = vmatprep.subr.mxu0 0.0
    %1493 = vmatpush1.msra.mxu0 0.0
    %1494 = vmatprep.subr.mxu0 0.0
    %1495 = vmatpush1.msra.mxu0 0.0
    %1496 = vmatprep.subr.mxu0 0.0
    %1497 = vmatpush1.msra.mxu0 0.0
    %1498 = vmatprep.subr.mxu0 0.0
    %1499 = vmatpush1.msra.mxu0 0.0
    %1500 = vmatprep.subr.mxu0 0.0
    %1501 = vmatpush1.msra.mxu0 0.0
    %1502 = vmatprep.subr.mxu0 0.0
    %1503 = vmatpush1.msra.mxu0 0.0
    %1504 = vmatprep.mubr.f32.mxu0 0.0
    %1505 = vmatmul.mubr.f32.gmra.mrb[0].mxu0 %v1438
    %v1506 = vpop.f32.mrb[0].mxu0
    %v1507 = vadd.f32 0.0, %v1506
    %v1508 = vpop.f32.mrb[0].mxu0
    %1509 = vdwg.mxu0
    %v1510 = vadd.f32 %v1281, %v1507
    %v1511 = vtanh.pop %v1510
    %v1513 = vsel %vm58, %v1511, 0
    %1515 = vmatprep.subr.mxu0 0.0
    %1516 = vmatpush1.msra.mxu0 %v1271
    %1517 = vmatprep.subr.mxu0 0.0
    %1518 = vmatpush1.msra.mxu0 %v1272
    %1519 = vmatprep.subr.mxu0 0.0
    %1520 = vmatpush1.msra.mxu0 %v1273
    %1521 = vmatprep.subr.mxu0 0.0
    %1522 = vmatpush1.msra.mxu0 %v1274
    %1523 = vmatprep.subr.mxu0 0.0
    %1524 = vmatpush1.msra.mxu0 %v1275
    %1525 = vmatprep.subr.mxu0 0.0
    %1526 = vmatpush1.msra.mxu0 %v1276
    %1527 = vmatprep.subr.mxu0 0.0
    %1528 = vmatpush1.msra.mxu0 %v1277
    %1529 = vmatprep.subr.mxu0 0.0
    %1530 = vmatpush1.msra.mxu0 %v1278
    %1531 = vmatprep.subr.mxu0 0.0
    %1532 = vmatpush1.msra.mxu0 0.0
    %1533 = vmatprep.subr.mxu0 0.0
    %1534 = vmatpush1.msra.mxu0 0.0
    %1535 = vmatprep.subr.mxu0 0.0
    %1536 = vmatpush1.msra.mxu0 0.0
    %1537 = vmatprep.subr.mxu0 0.0
    %1538 = vmatpush1.msra.mxu0 0.0
    %1539 = vmatprep.subr.mxu0 0.0
    %1540 = vmatpush1.msra.mxu0 0.0
    %1541 = vmatprep.subr.mxu0 0.0
    %1542 = vmatpush1.msra.mxu0 0.0
    %1543 = vmatprep.subr.mxu0 0.0
    %1544 = vmatpush1.msra.mxu0 0.0
    %1545 = vmatprep.subr.mxu0 0.0
    %1546 = vmatpush1.msra.mxu0 0.0
    %1547 = vmatprep.subr.mxu0 0.0
    %1548 = vmatpush1.msra.mxu0 0.0
    %1549 = vmatprep.subr.mxu0 0.0
    %1550 = vmatpush1.msra.mxu0 0.0
    %1551 = vmatprep.subr.mxu0 0.0
    %1552 = vmatpush1.msra.mxu0 0.0
    %1553 = vmatprep.subr.mxu0 0.0
    %1554 = vmatpush1.msra.mxu0 0.0
    %1555 = vmatprep.subr.mxu0 0.0
    %1556 = vmatpush1.msra.mxu0 0.0
    %1557 = vmatprep.subr.mxu0 0.0
    %1558 = vmatpush1.msra.mxu0 0.0
    %1559 = vmatprep.subr.mxu0 0.0
    %1560 = vmatpush1.msra.mxu0 0.0
    %1561 = vmatprep.subr.mxu0 0.0
    %1562 = vmatpush1.msra.mxu0 0.0
    %1563 = vmatprep.subr.mxu0 0.0
    %1564 = vmatpush1.msra.mxu0 0.0
    %1565 = vmatprep.subr.mxu0 0.0
    %1566 = vmatpush1.msra.mxu0 0.0
    %1567 = vmatprep.subr.mxu0 0.0
    %1568 = vmatpush1.msra.mxu0 0.0
    %1569 = vmatprep.subr.mxu0 0.0
    %1570 = vmatpush1.msra.mxu0 0.0
    %1571 = vmatprep.subr.mxu0 0.0
    %1572 = vmatpush1.msra.mxu0 0.0
    %1573 = vmatprep.subr.mxu0 0.0
    %1574 = vmatpush1.msra.mxu0 0.0
    %1575 = vmatprep.subr.mxu0 0.0
    %1576 = vmatpush1.msra.mxu0 0.0
    %1577 = vmatprep.subr.mxu0 0.0
    %1578 = vmatpush1.msra.mxu0 0.0
    %1579 = vmatprep.mubr.f32.mxu0 0.0
    %1580 = vmatmul.mubr.f32.gmra.mrb[0].mxu0 %v1513
    %v1581 = vpop.f32.mrb[0].mxu0
    %v1582 = vadd.f32 0.0, %v1581
    %v1583 = vpop.f32.mrb[0].mxu0
    %1584 = vdwg.mxu0
    %v1585 = vadd.f32 %v1282, %v1582
    %v1586 = vtanh.pop %v1585
    %v1588 = vsel %vm58, %v1586, 0
    %1590 = vmatprep.subr.mxu0 0.0
    %1591 = vmatpush1.msra.mxu0 %v1271
    %1592 = vmatprep.subr.mxu0 0.0
    %1593 = vmatpush1.msra.mxu0 %v1272
    %1594 = vmatprep.subr.mxu0 0.0
    %1595 = vmatpush1.msra.mxu0 %v1273
    %1596 = vmatprep.subr.mxu0 0.0
    %1597 = vmatpush1.msra.mxu0 %v1274
    %1598 = vmatprep.subr.mxu0 0.0
    %1599 = vmatpush1.msra.mxu0 %v1275
    %1600 = vmatprep.subr.mxu0 0.0
    %1601 = vmatpush1.msra.mxu0 %v1276
    %1602 = vmatprep.subr.mxu0 0.0
    %1603 = vmatpush1.msra.mxu0 %v1277
    %1604 = vmatprep.subr.mxu0 0.0
    %1605 = vmatpush1.msra.mxu0 %v1278
    %1606 = vmatprep.subr.mxu0 0.0
    %1607 = vmatpush1.msra.mxu0 0.0
    %1608 = vmatprep.subr.mxu0 0.0
    %1609 = vmatpush1.msra.mxu0 0.0
    %1610 = vmatprep.subr.mxu0 0.0
    %1611 = vmatpush1.msra.mxu0 0.0
    %1612 = vmatprep.subr.mxu0 0.0
    %1613 = vmatpush1.msra.mxu0 0.0
    %1614 = vmatprep.subr.mxu0 0.0
    %1615 = vmatpush1.msra.mxu0 0.0
    %1616 = vmatprep.subr.mxu0 0.0
    %1617 = vmatpush1.msra.mxu0 0.0
    %1618 = vmatprep.subr.mxu0 0.0
    %1619 = vmatpush1.msra.mxu0 0.0
    %1620 = vmatprep.subr.mxu0 0.0
    %1621 = vmatpush1.msra.mxu0 0.0
    %1622 = vmatprep.subr.mxu0 0.0
    %1623 = vmatpush1.msra.mxu0 0.0
    %1624 = vmatprep.subr.mxu0 0.0
    %1625 = vmatpush1.msra.mxu0 0.0
    %1626 = vmatprep.subr.mxu0 0.0
    %1627 = vmatpush1.msra.mxu0 0.0
    %1628 = vmatprep.subr.mxu0 0.0
    %1629 = vmatpush1.msra.mxu0 0.0
    %1630 = vmatprep.subr.mxu0 0.0
    %1631 = vmatpush1.msra.mxu0 0.0
    %1632 = vmatprep.subr.mxu0 0.0
    %1633 = vmatpush1.msra.mxu0 0.0
    %1634 = vmatprep.subr.mxu0 0.0
    %1635 = vmatpush1.msra.mxu0 0.0
    %1636 = vmatprep.subr.mxu0 0.0
    %1637 = vmatpush1.msra.mxu0 0.0
    %1638 = vmatprep.subr.mxu0 0.0
    %1639 = vmatpush1.msra.mxu0 0.0
    %1640 = vmatprep.subr.mxu0 0.0
    %1641 = vmatpush1.msra.mxu0 0.0
    %1642 = vmatprep.subr.mxu0 0.0
    %1643 = vmatpush1.msra.mxu0 0.0
    %1644 = vmatprep.subr.mxu0 0.0
    %1645 = vmatpush1.msra.mxu0 0.0
    %1646 = vmatprep.subr.mxu0 0.0
    %1647 = vmatpush1.msra.mxu0 0.0
    %1648 = vmatprep.subr.mxu0 0.0
    %1649 = vmatpush1.msra.mxu0 0.0
    %1650 = vmatprep.subr.mxu0 0.0
    %1651 = vmatpush1.msra.mxu0 0.0
    %1652 = vmatprep.subr.mxu0 0.0
    %1653 = vmatpush1.msra.mxu0 0.0
    %1654 = vmatprep.mubr.f32.mxu0 0.0
    %1655 = vmatmul.mubr.f32.gmra.mrb[0].mxu0 %v1588
    %v1656 = vpop.f32.mrb[0].mxu0
    %v1657 = vadd.f32 0.0, %v1656
    %v1658 = vpop.f32.mrb[0].mxu0
    %1659 = vdwg.mxu0
    %v1660 = vadd.f32 %v1283, %v1657
    %v1661 = vtanh.pop %v1660
    %v1663 = vsel %vm58, %v1661, 0
    %1665 = vmatprep.subr.mxu0 0.0
    %1666 = vmatpush1.msra.mxu0 %v1271
    %1667 = vmatprep.subr.mxu0 0.0
    %1668 = vmatpush1.msra.mxu0 %v1272
    %1669 = vmatprep.subr.mxu0 0.0
    %1670 = vmatpush1.msra.mxu0 %v1273
    %1671 = vmatprep.subr.mxu0 0.0
    %1672 = vmatpush1.msra.mxu0 %v1274
    %1673 = vmatprep.subr.mxu0 0.0
    %1674 = vmatpush1.msra.mxu0 %v1275
    %1675 = vmatprep.subr.mxu0 0.0
    %1676 = vmatpush1.msra.mxu0 %v1276
    %1677 = vmatprep.subr.mxu0 0.0
    %1678 = vmatpush1.msra.mxu0 %v1277
    %1679 = vmatprep.subr.mxu0 0.0
    %1680 = vmatpush1.msra.mxu0 %v1278
    %1681 = vmatprep.subr.mxu0 0.0
    %1682 = vmatpush1.msra.mxu0 0.0
    %1683 = vmatprep.subr.mxu0 0.0
    %1684 = vmatpush1.msra.mxu0 0.0
    %1685 = vmatprep.subr.mxu0 0.0
    %1686 = vmatpush1.msra.mxu0 0.0
    %1687 = vmatprep.subr.mxu0 0.0
    %1688 = vmatpush1.msra.mxu0 0.0
    %1689 = vmatprep.subr.mxu0 0.0
    %1690 = vmatpush1.msra.mxu0 0.0
    %1691 = vmatprep.subr.mxu0 0.0
    %1692 = vmatpush1.msra.mxu0 0.0
    %1693 = vmatprep.subr.mxu0 0.0
    %1694 = vmatpush1.msra.mxu0 0.0
    %1695 = vmatprep.subr.mxu0 0.0
    %1696 = vmatpush1.msra.mxu0 0.0
    %1697 = vmatprep.subr.mxu0 0.0
    %1698 = vmatpush1.msra.mxu0 0.0
    %1699 = vmatprep.subr.mxu0 0.0
    %1700 = vmatpush1.msra.mxu0 0.0
    %1701 = vmatprep.subr.mxu0 0.0
    %1702 = vmatpush1.msra.mxu0 0.0
    %1703 = vmatprep.subr.mxu0 0.0
    %1704 = vmatpush1.msra.mxu0 0.0
    %1705 = vmatprep.subr.mxu0 0.0
    %1706 = vmatpush1.msra.mxu0 0.0
    %1707 = vmatprep.subr.mxu0 0.0
    %1708 = vmatpush1.msra.mxu0 0.0
    %1709 = vmatprep.subr.mxu0 0.0
    %1710 = vmatpush1.msra.mxu0 0.0
    %1711 = vmatprep.subr.mxu0 0.0
    %1712 = vmatpush1.msra.mxu0 0.0
    %1713 = vmatprep.subr.mxu0 0.0
    %1714 = vmatpush1.msra.mxu0 0.0
    %1715 = vmatprep.subr.mxu0 0.0
    %1716 = vmatpush1.msra.mxu0 0.0
    %1717 = vmatprep.subr.mxu0 0.0
    %1718 = vmatpush1.msra.mxu0 0.0
    %1719 = vmatprep.subr.mxu0 0.0
    %1720 = vmatpush1.msra.mxu0 0.0
    %1721 = vmatprep.subr.mxu0 0.0
    %1722 = vmatpush1.msra.mxu0 0.0
    %1723 = vmatprep.subr.mxu0 0.0
    %1724 = vmatpush1.msra.mxu0 0.0
    %1725 = vmatprep.subr.mxu0 0.0
    %1726 = vmatpush1.msra.mxu0 0.0
    %1727 = vmatprep.subr.mxu0 0.0
    %1728 = vmatpush1.msra.mxu0 0.0
    %1729 = vmatprep.mubr.f32.mxu0 0.0
    %1730 = vmatmul.mubr.f32.gmra.mrb[0].mxu0 %v1663
    %v1731 = vpop.f32.mrb[0].mxu0
    %v1732 = vadd.f32 0.0, %v1731
    %v1733 = vpop.f32.mrb[0].mxu0
    %1734 = vdwg.mxu0
    %v1735 = vadd.f32 %v1284, %v1732
    %v1736 = vtanh.pop %v1735
    %v1738 = vsel %vm58, %v1736, 0
    %1740 = vmatprep.subr.mxu0 0.0
    %1741 = vmatpush1.msra.mxu0 %v1271
    %1742 = vmatprep.subr.mxu0 0.0
    %1743 = vmatpush1.msra.mxu0 %v1272
    %1744 = vmatprep.subr.mxu0 0.0
    %1745 = vmatpush1.msra.mxu0 %v1273
    %1746 = vmatprep.subr.mxu0 0.0
    %1747 = vmatpush1.msra.mxu0 %v1274
    %1748 = vmatprep.subr.mxu0 0.0
    %1749 = vmatpush1.msra.mxu0 %v1275
    %1750 = vmatprep.subr.mxu0 0.0
    %1751 = vmatpush1.msra.mxu0 %v1276
    %1752 = vmatprep.subr.mxu0 0.0
    %1753 = vmatpush1.msra.mxu0 %v1277
    %1754 = vmatprep.subr.mxu0 0.0
    %1755 = vmatpush1.msra.mxu0 %v1278
    %1756 = vmatprep.subr.mxu0 0.0
    %1757 = vmatpush1.msra.mxu0 0.0
    %1758 = vmatprep.subr.mxu0 0.0
    %1759 = vmatpush1.msra.mxu0 0.0
    %1760 = vmatprep.subr.mxu0 0.0
    %1761 = vmatpush1.msra.mxu0 0.0
    %1762 = vmatprep.subr.mxu0 0.0
    %1763 = vmatpush1.msra.mxu0 0.0
    %1764 = vmatprep.subr.mxu0 0.0
    %1765 = vmatpush1.msra.mxu0 0.0
    %1766 = vmatprep.subr.mxu0 0.0
    %1767 = vmatpush1.msra.mxu0 0.0
    %1768 = vmatprep.subr.mxu0 0.0
    %1769 = vmatpush1.msra.mxu0 0.0
    %1770 = vmatprep.subr.mxu0 0.0
    %1771 = vmatpush1.msra.mxu0 0.0
    %1772 = vmatprep.subr.mxu0 0.0
    %1773 = vmatpush1.msra.mxu0 0.0
    %1774 = vmatprep.subr.mxu0 0.0
    %1775 = vmatpush1.msra.mxu0 0.0
    %1776 = vmatprep.subr.mxu0 0.0
    %1777 = vmatpush1.msra.mxu0 0.0
    %1778 = vmatprep.subr.mxu0 0.0
    %1779 = vmatpush1.msra.mxu0 0.0
    %1780 = vmatprep.subr.mxu0 0.0
    %1781 = vmatpush1.msra.mxu0 0.0
    %1782 = vmatprep.subr.mxu0 0.0
    %1783 = vmatpush1.msra.mxu0 0.0
    %1784 = vmatprep.subr.mxu0 0.0
    %1785 = vmatpush1.msra.mxu0 0.0
    %1786 = vmatprep.subr.mxu0 0.0
    %1787 = vmatpush1.msra.mxu0 0.0
    %1788 = vmatprep.subr.mxu0 0.0
    %1789 = vmatpush1.msra.mxu0 0.0
    %1790 = vmatprep.subr.mxu0 0.0
    %1791 = vmatpush1.msra.mxu0 0.0
    %1792 = vmatprep.subr.mxu0 0.0
    %1793 = vmatpush1.msra.mxu0 0.0
    %1794 = vmatprep.subr.mxu0 0.0
    %1795 = vmatpush1.msra.mxu0 0.0
    %1796 = vmatprep.subr.mxu0 0.0
    %1797 = vmatpush1.msra.mxu0 0.0
    %1798 = vmatprep.subr.mxu0 0.0
    %1799 = vmatpush1.msra.mxu0 0.0
    %1800 = vmatprep.subr.mxu0 0.0
    %1801 = vmatpush1.msra.mxu0 0.0
    %1802 = vmatprep.subr.mxu0 0.0
    %1803 = vmatpush1.msra.mxu0 0.0
    %1804 = vmatprep.mubr.f32.mxu0 0.0
    %1805 = vmatmul.mubr.f32.gmra.mrb[0].mxu0 %v1738
    %v1806 = vpop.f32.mrb[0].mxu0
    %v1807 = vadd.f32 0.0, %v1806
    %v1808 = vpop.f32.mrb[0].mxu0
    %1809 = vdwg.mxu0
    %v1810 = vadd.f32 %v1285, %v1807
    %v1811 = vtanh.pop %v1810
    %v1813 = vsel %vm58, %v1811, 0
    %1815 = vmatprep.subr.mxu0 0.0
    %1816 = vmatpush1.msra.mxu0 %v1271
    %1817 = vmatprep.subr.mxu0 0.0
    %1818 = vmatpush1.msra.mxu0 %v1272
    %1819 = vmatprep.subr.mxu0 0.0
    %1820 = vmatpush1.msra.mxu0 %v1273
    %1821 = vmatprep.subr.mxu0 0.0
    %1822 = vmatpush1.msra.mxu0 %v1274
    %1823 = vmatprep.subr.mxu0 0.0
    %1824 = vmatpush1.msra.mxu0 %v1275
    %1825 = vmatprep.subr.mxu0 0.0
    %1826 = vmatpush1.msra.mxu0 %v1276
    %1827 = vmatprep.subr.mxu0 0.0
    %1828 = vmatpush1.msra.mxu0 %v1277
    %1829 = vmatprep.subr.mxu0 0.0
    %1830 = vmatpush1.msra.mxu0 %v1278
    %1831 = vmatprep.subr.mxu0 0.0
    %1832 = vmatpush1.msra.mxu0 0.0
    %1833 = vmatprep.subr.mxu0 0.0
    %1834 = vmatpush1.msra.mxu0 0.0
    %1835 = vmatprep.subr.mxu0 0.0
    %1836 = vmatpush1.msra.mxu0 0.0
    %1837 = vmatprep.subr.mxu0 0.0
    %1838 = vmatpush1.msra.mxu0 0.0
    %1839 = vmatprep.subr.mxu0 0.0
    %1840 = vmatpush1.msra.mxu0 0.0
    %1841 = vmatprep.subr.mxu0 0.0
    %1842 = vmatpush1.msra.mxu0 0.0
    %1843 = vmatprep.subr.mxu0 0.0
    %1844 = vmatpush1.msra.mxu0 0.0
    %1845 = vmatprep.subr.mxu0 0.0
    %1846 = vmatpush1.msra.mxu0 0.0
    %1847 = vmatprep.subr.mxu0 0.0
    %1848 = vmatpush1.msra.mxu0 0.0
    %1849 = vmatprep.subr.mxu0 0.0
    %1850 = vmatpush1.msra.mxu0 0.0
    %1851 = vmatprep.subr.mxu0 0.0
    %1852 = vmatpush1.msra.mxu0 0.0
    %1853 = vmatprep.subr.mxu0 0.0
    %1854 = vmatpush1.msra.mxu0 0.0
    %1855 = vmatprep.subr.mxu0 0.0
    %1856 = vmatpush1.msra.mxu0 0.0
    %1857 = vmatprep.subr.mxu0 0.0
    %1858 = vmatpush1.msra.mxu0 0.0
    %1859 = vmatprep.subr.mxu0 0.0
    %1860 = vmatpush1.msra.mxu0 0.0
    %1861 = vmatprep.subr.mxu0 0.0
    %1862 = vmatpush1.msra.mxu0 0.0
    %1863 = vmatprep.subr.mxu0 0.0
    %1864 = vmatpush1.msra.mxu0 0.0
    %1865 = vmatprep.subr.mxu0 0.0
    %1866 = vmatpush1.msra.mxu0 0.0
    %1867 = vmatprep.subr.mxu0 0.0
    %1868 = vmatpush1.msra.mxu0 0.0
    %1869 = vmatprep.subr.mxu0 0.0
    %1870 = vmatpush1.msra.mxu0 0.0
    %1871 = vmatprep.subr.mxu0 0.0
    %1872 = vmatpush1.msra.mxu0 0.0
    %1873 = vmatprep.subr.mxu0 0.0
    %1874 = vmatpush1.msra.mxu0 0.0
    %1875 = vmatprep.subr.mxu0 0.0
    %1876 = vmatpush1.msra.mxu0 0.0
    %1877 = vmatprep.subr.mxu0 0.0
    %1878 = vmatpush1.msra.mxu0 0.0
    %1879 = vmatprep.mubr.f32.mxu0 0.0
    %1880 = vmatmul.mubr.f32.gmra.mrb[0].mxu0 %v1813
    %v1881 = vpop.f32.mrb[0].mxu0
    %v1882 = vadd.f32 0.0, %v1881
    %v1883 = vpop.f32.mrb[0].mxu0
    %1884 = vdwg.mxu0
    %v1885 = vadd.f32 %v1286, %v1882
    %v1886 = vtanh.pop %v1885
    %v1887 = vsel %vm25, %v1361, %v1886
    %v1888 = vsel %vm25, %v1436, %v1811
    %v1889 = vsel %vm25, %v1511, %v1736
    %v1890 = vsel %vm25, %v1586, %v1661
    %v1891 = vsel %vm25, %v1661, %v1586
    %v1892 = vsel %vm25, %v1736, %v1511
    %v1893 = vsel %vm25, %v1811, %v1436
    %v1894 = vsel %vm25, %v1886, %v1361
    %s1895 = scalar_lea.vmem %s6, 2
    %1896 = vst.msk [vmem:[%s1895] sm:$0x3] %vm667, %v1886
    %1897 = vst.msk [vmem:[#allocation2] sm:$0x3] %vm667, %v1887
    %s1898 = scalar_lea.vmem [#allocation2], 2
    %1899 = vst.msk [vmem:[%s1898] sm:$0x3] %vm667, %v1888
    %s1900 = scalar_lea.vmem [#allocation2], 4
    %1901 = vst.msk [vmem:[%s1900] sm:$0x3] %vm667, %v1889
    %s1902 = scalar_lea.vmem [#allocation2], 6
    %1903 = vst.msk [vmem:[%s1902] sm:$0x3] %vm667, %v1890
    %s1904 = scalar_lea.vmem [#allocation2], 8
    %1905 = vst.msk [vmem:[%s1904] sm:$0x3] %vm667, %v1891
    %s1906 = scalar_lea.vmem [#allocation2], 10
    %1907 = vst.msk [vmem:[%s1906] sm:$0x3] %vm667, %v1892
    %s1908 = scalar_lea.vmem [#allocation2], 12
    %1909 = vst.msk [vmem:[%s1908] sm:$0x3] %vm667, %v1893
    %s1910 = scalar_lea.vmem [#allocation2], 14
    %1911 = vst.msk [vmem:[%s1910] sm:$0x3] %vm667, %v1894
    // Predicated region
    $region22: #{rnn_forward.1} parent=1 // pred_check
      _
    $region23: #{rnn_forward.1} parent=1 // pred_check_branch
      %1913 = sbr.rel (0) target = $region25
    $region24: #{rnn_forward.1} parent=1 // pred_region
      %s1915 = ssub.s32 256, 256
      %1916 = vsyncadd [#allocation3], %s1915
      %s1917 = sshll.u32 [#allocation2], 4
      %s1918 = int_to_ptr.vmem [resolvable:$true] %s1917
      %1923 = dma.vmem_to_hbm [thread:$0]  %s1918, 256, %s5, [#allocation3], 32, 32, 2
    $region25: #{rnn_forward.1} parent=1 // pred_fallthru
      _
    // Predicated region
    $region26: #{rnn_forward.1} parent=1 // pred_check
      _
    $region27: #{rnn_forward.1} parent=1 // pred_check_branch
      %1925 = sbr.rel (0) target = $region29
    $region28: #{rnn_forward.1} parent=1 // pred_region
      _
    $region29: #{rnn_forward.1} parent=1 // pred_fallthru
      _
    // Predicated region
    $region30: #{rnn_forward.1} parent=1 // pred_check
      _
    $region31: #{rnn_forward.1} parent=1 // pred_check_branch
      %1927 = sbr.rel (0) target = $region33
    $region32: #{rnn_forward.1} parent=1 // pred_region
      %1928 = dma.done [#allocation3], 256
    $region33: #{rnn_forward.1} parent=1 // pred_fallthru
      _
    // Predicated region
    $region34: #{rnn_forward.1} parent=1 // pred_check
      _
    $region35: #{rnn_forward.1} parent=1 // pred_check_branch
      %1930 = sbr.rel (0) target = $region37
    $region36: #{rnn_forward.1} parent=1 // pred_region
      _
    $region37: #{rnn_forward.1} parent=1 // pred_fallthru
      _
    %1931 = vsyncpa [#allocation3], 1

</llo_original>
